<compile_context>
chip_gen: v7x
topology: tpu7x:2x2x1
jax: 0.10.0
libtpu: 0.0.40
codegen_flags: <defaults>
</compile_context>

<pallas_src>
import functools

import jax
import jax.numpy as jnp
from jax.experimental import pallas as pl
from jax.experimental.pallas import tpu as pltpu

# Matmul-operand dtype.  Keep f32 to match the PyTorch module's numerics exactly;
# on v6e/v7x set to jnp.bfloat16 for ~2x MXU rate (accumulation stays f32).
_MM_DTYPE = jnp.float32


def _round_up(x, m):
    return ((x + m - 1) // m) * m


# ---------------------------------------------------------------------------
# Pallas kernel: one CGConv layer (optionally with fused BN + classifier head)
# ---------------------------------------------------------------------------
def _cgconv_kernel(tgt_ref, gf_ref, gs_ref, ea_ref, wfe_ref, wse_ref,
                   bf_ref, bs_ref, x_ref, wt_ref, bt_ref, *rest,
                   relu, fuse_head):
    if fuse_head:
        (gamma_ref, beta_ref, mean_ref, var_ref, wc_ref, bc_ref,
         out_ref, acc_ref) = rest
    else:
        out_ref, acc_ref = rest

    e_step = pl.program_id(1)

    @pl.when(e_step == 0)
    def _init():
        acc_ref[...] = jnp.zeros_like(acc_ref)

    # Gated message for this edge tile: node-projection gathers come in precomputed
    # (gf/gs); only the edge-feature part runs on the MXU here.
    ea = ea_ref[...].astype(_MM_DTYPE)
    pre_f = (gf_ref[...]
             + jnp.dot(ea, wfe_ref[...].astype(_MM_DTYPE),
                       preferred_element_type=jnp.float32)
             + bf_ref[...])
    pre_s = (gs_ref[...]
             + jnp.dot(ea, wse_ref[...].astype(_MM_DTYPE),
                       preferred_element_type=jnp.float32)
             + bs_ref[...])
    msg = jax.nn.sigmoid(pre_f) * jax.nn.softplus(pre_s)        # (TE, C)

    # In-VMEM one-hot scatter-add restricted to this node tile (no (N,E) HBM matrix).
    tn = acc_ref.shape[0]
    te = tgt_ref.shape[1]
    row_ids = (jax.lax.broadcasted_iota(jnp.int32, (tn, te), 0)
               + pl.program_id(0) * tn)
    onehot = (row_ids == tgt_ref[...]).astype(jnp.float32)       # (TN, TE)
    acc_ref[...] += jnp.dot(onehot, msg, preferred_element_type=jnp.float32)

    @pl.when(e_step == pl.num_programs(1) - 1)
    def _finalize():
        self_t = (jnp.dot(x_ref[...].astype(_MM_DTYPE),
                          wt_ref[...].astype(_MM_DTYPE),
                          preferred_element_type=jnp.float32)
                  + bt_ref[...])
        h = acc_ref[...] + self_t
        if relu:
            h = jnp.maximum(h, 0.0)
        if fuse_head:
            inv = jax.lax.rsqrt(var_ref[...] + 1e-5)
            hn = (h - mean_ref[...]) * inv * gamma_ref[...] + beta_ref[...]
            out_ref[...] = (jnp.dot(hn.astype(_MM_DTYPE),
                                    wc_ref[...].astype(_MM_DTYPE),
                                    preferred_element_type=jnp.float32)
                            + bc_ref[...])
        else:
            out_ref[...] = h


# ---------------------------------------------------------------------------
# Layer wrapper: weight split, per-node projections + per-edge gathers (glue),
# then the tiled pallas_call.
# ---------------------------------------------------------------------------
def cgconv_layer(h, src_g, tgt_g, tgt_scatter, ea_pad, params, *, relu,
                 head_params=None, tile_n=128, tile_e=512):
    """h: (N_pad, F); src_g/tgt_g: (E_pad,) gather-safe indices (pad->0);
    tgt_scatter: (1, E_pad) scatter targets (pad->-1, never matches);
    ea_pad: (E_pad, D_pad) zero-padded edge features."""
    wf, bf, ws, bs, wt, bt = params
    n_pad, f = h.shape
    c = wt.shape[1]
    e_pad, d_pad = ea_pad.shape
    d = wf.shape[0] - 2 * f
    assert n_pad % tile_n == 0 and e_pad % tile_e == 0
    assert tile_n % 8 == 0 and tile_e % 128 == 0

    # Split W_f / W_s into (target-node, source-node, edge) blocks; pad edge block.
    wfi, wfj, wfe = wf[:f], wf[f:2 * f], wf[2 * f:]
    wsi, wsj, wse = ws[:f], ws[f:2 * f], ws[2 * f:]
    wfe = jnp.pad(wfe, ((0, d_pad - d), (0, 0)))
    wse = jnp.pad(wse, ((0, d_pad - d), (0, 0)))

    # Per-node projections once per layer ((N,F)@(F,C)); per-edge gather in glue.
    gf = jnp.take(h @ wfi, tgt_g, axis=0) + jnp.take(h @ wfj, src_g, axis=0)
    gs = jnp.take(h @ wsi, tgt_g, axis=0) + jnp.take(h @ wsj, src_g, axis=0)

    def const_spec(a):
        # Constant block index -> fetched once, not re-DMA'd per grid step.
        return pl.BlockSpec(a.shape, lambda n, e: (0, 0))

    args = [tgt_scatter, gf, gs, ea_pad, wfe, wse, bf, bs, h, wt, bt]
    in_specs = [
        pl.BlockSpec((1, tile_e), lambda n, e: (0, e)),       # scatter targets
        pl.BlockSpec((tile_e, c), lambda n, e: (e, 0)),       # gathered f-projection
        pl.BlockSpec((tile_e, c), lambda n, e: (e, 0)),       # gathered s-projection
        pl.BlockSpec((tile_e, d_pad), lambda n, e: (e, 0)),   # edge features
        const_spec(wfe), const_spec(wse), const_spec(bf), const_spec(bs),
        pl.BlockSpec((tile_n, f), lambda n, e: (n, 0)),       # node features (self term)
        const_spec(wt), const_spec(bt),
    ]

    fuse_head = head_params is not None
    if fuse_head:
        gamma, beta, rmean, rvar, wc, bc = head_params
        args += [gamma, beta, rmean, rvar, wc, bc]
        in_specs += [const_spec(gamma), const_spec(beta), const_spec(rmean),
                     const_spec(rvar), const_spec(wc), const_spec(bc)]
        out_c = wc.shape[1]
    else:
        out_c = c

    kernel = functools.partial(_cgconv_kernel, relu=relu, fuse_head=fuse_head)
    return pl.pallas_call(
        kernel,
        out_shape=jax.ShapeDtypeStruct((n_pad, out_c), jnp.float32),
        grid=(n_pad // tile_n, e_pad // tile_e),
        in_specs=in_specs,
        out_specs=pl.BlockSpec((tile_n, out_c), lambda n, e: (n, 0)),
        scratch_shapes=[pltpu.VMEM((tile_n, c), jnp.float32)],
        compiler_params=pltpu.CompilerParams(
            dimension_semantics=("parallel", "arbitrary"),
            # Raise to ~96 MiB on v5e/v6e for larger tiles; keep <= 64 MiB on v7x.
            vmem_limit_bytes=48 * 1024 * 1024),
    )(*args)


# ---------------------------------------------------------------------------
# Full network forward (pad once, run 3 convs, head fused into conv3, slice pad off)
# ---------------------------------------------------------------------------
def cgcn_net_forward(x, src, tgt, edge_attr, p1, p2, p3, bn, clf,
                     *, tile_n=128, tile_e=512):
    n = x.shape[0]
    e, d = edge_attr.shape
    n_pad = _round_up(n, tile_n)
    e_pad = _round_up(e, tile_e)
    d_pad = _round_up(d, 128)

    x_p = jnp.pad(x, ((0, n_pad - n), (0, 0)))
    ea_p = jnp.pad(edge_attr, ((0, e_pad - e), (0, d_pad - d)))
    src_g = jnp.pad(src, (0, e_pad - e))                       # pad -> node 0 (finite, unused)
    tgt_g = jnp.pad(tgt, (0, e_pad - e))
    tgt_scatter = jnp.pad(tgt, (0, e_pad - e), constant_values=-1).reshape(1, e_pad)

    gamma, beta, rmean, rvar = bn
    wc, bc = clf
    k = wc.shape[1]
    k_pad = _round_up(k, 128)                                  # lane-dense classifier output
    wc_p = jnp.pad(wc, ((0, 0), (0, k_pad - k)))
    bc_p = jnp.pad(bc, ((0, 0), (0, k_pad - k)))

    # TODO(synk): dropout is stochastic in train mode; implemented as identity (eval).
    h = cgconv_layer(x_p, src_g, tgt_g, tgt_scatter, ea_p, p1, relu=True,
                     tile_n=tile_n, tile_e=tile_e)             # conv1 + ReLU (+ dropout)
    h = cgconv_layer(h, src_g, tgt_g, tgt_scatter, ea_p, p2, relu=True,
                     tile_n=tile_n, tile_e=tile_e)             # conv2 + ReLU (+ dropout)
    out = cgconv_layer(h, src_g, tgt_g, tgt_scatter, ea_p, p3, relu=False,
                       head_params=(gamma, beta, rmean, rvar, wc_p, bc_p),
                       tile_n=tile_n, tile_e=tile_e)           # conv3 + BN + classifier
    return out[:n, :k]


# ---------------------------------------------------------------------------
# Deterministic parameter init (shapes follow the PyTorch module's __init__)
# ---------------------------------------------------------------------------
def init_linear(key, fan_in, fan_out):
    k1, k2 = jax.random.split(key)
    bound = 1.0 / jnp.sqrt(jnp.float32(fan_in))
    w = jax.random.uniform(k1, (fan_in, fan_out), jnp.float32, -bound, bound)
    b = jax.random.uniform(k2, (1, fan_out), jnp.float32, -bound, bound)
    return w, b


def init_cgconv(key, in_c, out_c, dim):
    k1, k2, k3 = jax.random.split(key, 3)
    wf, bf = init_linear(k1, 2 * in_c + dim, out_c)   # lin_f
    ws, bs = init_linear(k2, 2 * in_c + dim, out_c)   # lin_s
    wt, bt = init_linear(k3, in_c, out_c)             # lin_t
    return (wf, bf, ws, bs, wt, bt)


# ---------------------------------------------------------------------------
# Pure-JAX reference (numeric sanity check)
# ---------------------------------------------------------------------------
def _ref_cgconv(x, src, tgt, edge_attr, params, relu):
    wf, bf, ws, bs, wt, bt = params
    z = jnp.concatenate([x[tgt], x[src], edge_attr], axis=-1)
    msg = jax.nn.sigmoid(z @ wf + bf) * jax.nn.softplus(z @ ws + bs)
    agg = jnp.zeros((x.shape[0], wt.shape[1]), jnp.float32).at[tgt].add(msg)
    out = agg + x @ wt + bt
    return jnp.maximum(out, 0.0) if relu else out


def _ref_forward(x, src, tgt, edge_attr, p1, p2, p3, bn, clf):
    h = _ref_cgconv(x, src, tgt, edge_attr, p1, True)
    h = _ref_cgconv(h, src, tgt, edge_attr, p2, True)
    h = _ref_cgconv(h, src, tgt, edge_attr, p3, False)
    gamma, beta, rmean, rvar = bn
    hn = (h - rmean) * jax.lax.rsqrt(rvar + 1e-5) * gamma + beta
    wc, bc = clf
    return hn @ wc + bc


# ---------------------------------------------------------------------------
if __name__ == "__main__":
    key = jax.random.PRNGKey(0)
    keys = jax.random.split(key, 10)

    # Small graph; channel dims follow the module defaults (already lane aligned).
    N, E = 96, 384                 # nodes, edges
    F_IN, D = 16, 8                # num_node_features, num_edge_features
    INTER, OUT_DIM = 128, 256      # interlayer_dim, output_dim (module defaults)
    NUM_CLASSES = 10

    x = jax.random.normal(keys[0], (N, F_IN), jnp.float32)
    edge_attr = jax.random.normal(keys[1], (E, D), jnp.float32)
    src = jax.random.randint(keys[2], (E,), 0, N, dtype=jnp.int32)
    tgt = jax.random.randint(keys[3], (E,), 0, N, dtype=jnp.int32)

    p1 = init_cgconv(keys[4], F_IN, INTER, D)
    p2 = init_cgconv(keys[5], INTER, INTER, D)
    p3 = init_cgconv(keys[6], INTER, OUT_DIM, D)
    # BatchNorm1d(output_dim): affine params + running stats (eval mode)
    bn = (jnp.ones((1, OUT_DIM), jnp.float32),   # gamma
          jnp.zeros((1, OUT_DIM), jnp.float32),  # beta
          jnp.zeros((1, OUT_DIM), jnp.float32),  # running mean
          jnp.ones((1, OUT_DIM), jnp.float32))   # running var
    clf = init_linear(keys[7], OUT_DIM, NUM_CLASSES)

    logits = cgcn_net_forward(x, src, tgt, edge_attr, p1, p2, p3, bn, clf,
                              tile_n=64, tile_e=256)
    logits = jax.block_until_ready(logits)

    ref = _ref_forward(x, src, tgt, edge_attr, p1, p2, p3, bn, clf)
    assert logits.shape == (N, NUM_CLASSES)
    err = float(jnp.max(jnp.abs(logits - ref)))
    assert err < 2e-3, f"mismatch vs pure-JAX reference: {err}"

    print("KERNEL_OK")
</pallas_src>

<mosaic_0001>
module attributes {stable_mosaic.version = 11 : i64} {
  func.func @_cgconv_kernel(%arg0: i32, %arg1: i32, %arg2: memref<1x256xi32, #tpu.memory_space<vmem>>, %arg3: memref<256x128xf32, #tpu.memory_space<vmem>>, %arg4: memref<256x128xf32, #tpu.memory_space<vmem>>, %arg5: memref<256x128xf32, #tpu.memory_space<vmem>>, %arg6: memref<128x128xf32, #tpu.memory_space<vmem>>, %arg7: memref<128x128xf32, #tpu.memory_space<vmem>>, %arg8: memref<1x128xf32, #tpu.memory_space<vmem>>, %arg9: memref<1x128xf32, #tpu.memory_space<vmem>>, %arg10: memref<64x16xf32, #tpu.memory_space<vmem>>, %arg11: memref<16x128xf32, #tpu.memory_space<vmem>>, %arg12: memref<1x128xf32, #tpu.memory_space<vmem>>, %arg13: memref<64x128xf32, #tpu.memory_space<vmem>>, %arg14: memref<64x128xf32, #tpu.memory_space<vmem>>) attributes {dimension_semantics = [#tpu.dimension_semantics<parallel>, #tpu.dimension_semantics<arbitrary>], iteration_bounds = array<i64: 2, 2>, scalar_prefetch = 0 : i64, scratch_operands = 1 : i64, tpu.core_type = #tpu.core_type<tc>, window_params = [{transform_indices = @transform_0, window_bounds = array<i64: 1, 256>}, {transform_indices = @transform_1, window_bounds = array<i64: 256, 128>}, {transform_indices = @transform_2, window_bounds = array<i64: 256, 128>}, {transform_indices = @transform_3, window_bounds = array<i64: 256, 128>}, {pipeline_mode = #tpu.pipeline_mode<synchronous>, transform_indices = @transform_4, window_bounds = array<i64: 128, 128>}, {pipeline_mode = #tpu.pipeline_mode<synchronous>, transform_indices = @transform_5, window_bounds = array<i64: 128, 128>}, {pipeline_mode = #tpu.pipeline_mode<synchronous>, transform_indices = @transform_6, window_bounds = array<i64: 1, 128>}, {pipeline_mode = #tpu.pipeline_mode<synchronous>, transform_indices = @transform_7, window_bounds = array<i64: 1, 128>}, {transform_indices = @transform_8, window_bounds = array<i64: 64, 16>}, {pipeline_mode = #tpu.pipeline_mode<synchronous>, transform_indices = @transform_9, window_bounds = array<i64: 16, 128>}, {pipeline_mode = #tpu.pipeline_mode<synchronous>, transform_indices = @transform_10, window_bounds = array<i64: 1, 128>}, {transform_indices = @transform_11, window_bounds = array<i64: 64, 128>}]} {
    %c0_i32 = arith.constant 0 : i32
    %0 = arith.cmpi eq, %arg1, %c0_i32 : i32
    %1 = arith.extui %0 : i1 to i32
    %c0_i32_0 = arith.constant 0 : i32
    %2 = arith.cmpi ne, %1, %c0_i32_0 : i32
    scf.if %2 {
      %cst_26 = arith.constant 0.000000e+00 : f32
      %54 = vector.broadcast %cst_26 : f32 to vector<64x128xf32>
      %c0_27 = arith.constant 0 : index
      %c0_28 = arith.constant 0 : index
      %55 = vector.load %arg14[%c0_27, %c0_28] : memref<64x128xf32, #tpu.memory_space<vmem>>, vector<64x128xf32>
      tpu.vector_store %arg14[%c0_27, %c0_28], %54 {strides = array<i32>} : memref<64x128xf32, #tpu.memory_space<vmem>>, vector<64x128xf32>,
    } else {
    }
    %c0 = arith.constant 0 : index
    %c0_1 = arith.constant 0 : index
    %3 = vector.load %arg5[%c0, %c0_1] : memref<256x128xf32, #tpu.memory_space<vmem>>, vector<256x128xf32>
    %c0_2 = arith.constant 0 : index
    %c0_3 = arith.constant 0 : index
    %4 = vector.load %arg3[%c0_2, %c0_3] : memref<256x128xf32, #tpu.memory_space<vmem>>, vector<256x128xf32>
    %c0_4 = arith.constant 0 : index
    %c0_5 = arith.constant 0 : index
    %5 = vector.load %arg6[%c0_4, %c0_5] : memref<128x128xf32, #tpu.memory_space<vmem>>, vector<128x128xf32>
    %cst = arith.constant dense<0.000000e+00> : vector<256x128xf32>
    %6 = tpu.matmul %3, %5, %cst {dimension_numbers = #tpu.dot_dimension_numbers<[1], [0], [0], [1], [0, 0, 1, 1], [], []>} : vector<256x128xf32>, vector<128x128xf32>, vector<256x128xf32> -> vector<256x128xf32>
    %7 = arith.addf %4, %6 : vector<256x128xf32>
    %c0_6 = arith.constant 0 : index
    %c0_7 = arith.constant 0 : index
    %8 = vector.load %arg8[%c0_6, %c0_7] : memref<1x128xf32, #tpu.memory_space<vmem>>, vector<1x128xf32>
    %9 = vector.broadcast %8 : vector<1x128xf32> to vector<256x128xf32>
    %10 = arith.addf %7, %9 : vector<256x128xf32>
    %c0_8 = arith.constant 0 : index
    %c0_9 = arith.constant 0 : index
    %11 = vector.load %arg4[%c0_8, %c0_9] : memref<256x128xf32, #tpu.memory_space<vmem>>, vector<256x128xf32>
    %c0_10 = arith.constant 0 : index
    %c0_11 = arith.constant 0 : index
    %12 = vector.load %arg7[%c0_10, %c0_11] : memref<128x128xf32, #tpu.memory_space<vmem>>, vector<128x128xf32>
    %cst_12 = arith.constant dense<0.000000e+00> : vector<256x128xf32>
    %13 = tpu.matmul %3, %12, %cst_12 {dimension_numbers = #tpu.dot_dimension_numbers<[1], [0], [0], [1], [0, 0, 1, 1], [], []>} : vector<256x128xf32>, vector<128x128xf32>, vector<256x128xf32> -> vector<256x128xf32>
    %14 = arith.addf %11, %13 : vector<256x128xf32>
    %c0_13 = arith.constant 0 : index
    %c0_14 = arith.constant 0 : index
    %15 = vector.load %arg9[%c0_13, %c0_14] : memref<1x128xf32, #tpu.memory_space<vmem>>, vector<1x128xf32>
    %16 = vector.broadcast %15 : vector<1x128xf32> to vector<256x128xf32>
    %17 = arith.addf %14, %16 : vector<256x128xf32>
    %18 = arith.negf %10 : vector<256x128xf32>
    %19 = math.exp %18 : vector<256x128xf32>
    %cst_15 = arith.constant 1.000000e+00 : f32
    %20 = vector.broadcast %cst_15 : f32 to vector<256x128xf32>
    %21 = arith.addf %20, %19 : vector<256x128xf32>
    %22 = arith.divf %20, %21 : vector<256x128xf32>
    %cst_16 = arith.constant 0.000000e+00 : f32
    %23 = vector.broadcast %cst_16 : f32 to vector<256x128xf32>
    %24 = arith.maximumf %17, %23 : vector<256x128xf32>
    %25 = vector.broadcast %cst_16 : f32 to vector<256x128xf32>
    %26 = arith.subf %17, %25 : vector<256x128xf32>
    %27 = arith.cmpf one, %26, %26 : vector<256x128xf32>
    %28 = vector.broadcast %cst_16 : f32 to vector<256x128xf32>
    %29 = arith.addf %17, %28 : vector<256x128xf32>
    %30 = math.absf %26 : vector<256x128xf32>
    %cst_17 = arith.constant 0.000000e+00 : f32
    %31 = vector.broadcast %cst_17 : f32 to vector<256x128xf32>
    %32 = arith.subf %31, %30 : vector<256x128xf32>
    %33 = math.exp %32 : vector<256x128xf32>
    %34 = math.log1p %33 : vector<256x128xf32>
    %35 = arith.addf %24, %34 : vector<256x128xf32>
    %36 = arith.select %27, %29, %35 : vector<256x128xi1>, vector<256x128xf32>
    %37 = arith.mulf %22, %36 : vector<256x128xf32>
    %38 = tpu.iota {dimensions = array<i32: 0>} : vector<64x256xi32>
    %c64_i32 = arith.constant 64 : i32
    %39 = arith.muli %arg0, %c64_i32 : i32
    %40 = vector.broadcast %39 : i32 to vector<64x256xi32>
    %41 = arith.addi %38, %40 : vector<64x256xi32>
    %c0_18 = arith.constant 0 : index
    %c0_19 = arith.constant 0 : index
    %42 = vector.load %arg2[%c0_18, %c0_19] : memref<1x256xi32, #tpu.memory_space<vmem>>, vector<1x256xi32>
    %43 = vector.broadcast %42 : vector<1x256xi32> to vector<64x256xi32>
    %44 = arith.cmpi eq, %41, %43 : vector<64x256xi32>
    %45 = arith.extui %44 : vector<64x256xi1> to vector<64x256xi32>
    %46 = arith.sitofp %45 : vector<64x256xi32> to vector<64x256xf32>
    %c0_20 = arith.constant 0 : index
    %c0_21 = arith.constant 0 : index
    %47 = vector.load %arg14[%c0_20, %c0_21] : memref<64x128xf32, #tpu.memory_space<vmem>>, vector<64x128xf32>
    %cst_22 = arith.constant dense<0.000000e+00> : vector<64x128xf32>
    %48 = tpu.matmul %46, %37, %cst_22 {dimension_numbers = #tpu.dot_dimension_numbers<[1], [0], [0], [1], [0, 0, 1, 1], [], []>} : vector<64x256xf32>, vector<256x128xf32>, vector<64x128xf32> -> vector<64x128xf32>
    %49 = arith.addf %47, %48 : vector<64x128xf32>
    %c0_23 = arith.constant 0 : index
    %c0_24 = arith.constant 0 : index
    %50 = vector.load %arg14[%c0_23, %c0_24] : memref<64x128xf32, #tpu.memory_space<vmem>>, vector<64x128xf32>
    tpu.vector_store %arg14[%c0_23, %c0_24], %49 {strides = array<i32>} : memref<64x128xf32, #tpu.memory_space<vmem>>, vector<64x128xf32>,
    %c1_i32 = arith.constant 1 : i32
    %51 = arith.cmpi eq, %arg1, %c1_i32 : i32
    %52 = arith.extui %51 : i1 to i32
    %c0_i32_25 = arith.constant 0 : i32
    %53 = arith.cmpi ne, %52, %c0_i32_25 : i32
    scf.if %53 {
      %c0_26 = arith.constant 0 : index
      %c0_27 = arith.constant 0 : index
      %54 = vector.load %arg10[%c0_26, %c0_27] : memref<64x16xf32, #tpu.memory_space<vmem>>, vector<64x16xf32>
      %c0_28 = arith.constant 0 : index
      %c0_29 = arith.constant 0 : index
      %55 = vector.load %arg11[%c0_28, %c0_29] : memref<16x128xf32, #tpu.memory_space<vmem>>, vector<16x128xf32>
      %cst_30 = arith.constant dense<0.000000e+00> : vector<64x128xf32>
      %56 = tpu.matmul %54, %55, %cst_30 {dimension_numbers = #tpu.dot_dimension_numbers<[1], [0], [0], [1], [0, 0, 1, 1], [], []>} : vector<64x16xf32>, vector<16x128xf32>, vector<64x128xf32> -> vector<64x128xf32>
      %c0_31 = arith.constant 0 : index
      %c0_32 = arith.constant 0 : index
      %57 = vector.load %arg12[%c0_31, %c0_32] : memref<1x128xf32, #tpu.memory_space<vmem>>, vector<1x128xf32>
      %58 = vector.broadcast %57 : vector<1x128xf32> to vector<64x128xf32>
      %59 = arith.addf %56, %58 : vector<64x128xf32>
      %c0_33 = arith.constant 0 : index
      %c0_34 = arith.constant 0 : index
      %60 = vector.load %arg14[%c0_33, %c0_34] : memref<64x128xf32, #tpu.memory_space<vmem>>, vector<64x128xf32>
      %61 = arith.addf %60, %59 : vector<64x128xf32>
      %cst_35 = arith.constant 0.000000e+00 : f32
      %62 = vector.broadcast %cst_35 : f32 to vector<64x128xf32>
      %63 = arith.maximumf %61, %62 : vector<64x128xf32>
      %c0_36 = arith.constant 0 : index
      %c0_37 = arith.constant 0 : index
      %64 = vector.load %arg13[%c0_36, %c0_37] : memref<64x128xf32, #tpu.memory_space<vmem>>, vector<64x128xf32>
      tpu.vector_store %arg13[%c0_36, %c0_37], %63 {strides = array<i32>} : memref<64x128xf32, #tpu.memory_space<vmem>>, vector<64x128xf32>,
    } else {
    }
    return
  }
  func.func @transform_0(%arg0: i32, %arg1: i32) -> (i32, i32) {
    %c0_i32 = arith.constant 0 : i32
    %c0_i32_0 = arith.constant 0 : i32
    return %c0_i32, %arg1 : i32, i32
  }
  func.func @transform_1(%arg0: i32, %arg1: i32) -> (i32, i32) {
    %c0_i32 = arith.constant 0 : i32
    %c0_i32_0 = arith.constant 0 : i32
    return %arg1, %c0_i32 : i32, i32
  }
  func.func @transform_2(%arg0: i32, %arg1: i32) -> (i32, i32) {
    %c0_i32 = arith.constant 0 : i32
    %c0_i32_0 = arith.constant 0 : i32
    return %arg1, %c0_i32 : i32, i32
  }
  func.func @transform_3(%arg0: i32, %arg1: i32) -> (i32, i32) {
    %c0_i32 = arith.constant 0 : i32
    %c0_i32_0 = arith.constant 0 : i32
    return %arg1, %c0_i32 : i32, i32
  }
  func.func @transform_4(%arg0: i32, %arg1: i32) -> (i32, i32) {
    %c0_i32 = arith.constant 0 : i32
    %c0_i32_0 = arith.constant 0 : i32
    %c0_i32_1 = arith.constant 0 : i32
    return %c0_i32, %c0_i32_0 : i32, i32
  }
  func.func @transform_5(%arg0: i32, %arg1: i32) -> (i32, i32) {
    %c0_i32 = arith.constant 0 : i32
    %c0_i32_0 = arith.constant 0 : i32
    %c0_i32_1 = arith.constant 0 : i32
    return %c0_i32, %c0_i32_0 : i32, i32
  }
  func.func @transform_6(%arg0: i32, %arg1: i32) -> (i32, i32) {
    %c0_i32 = arith.constant 0 : i32
    %c0_i32_0 = arith.constant 0 : i32
    %c0_i32_1 = arith.constant 0 : i32
    return %c0_i32, %c0_i32_0 : i32, i32
  }
  func.func @transform_7(%arg0: i32, %arg1: i32) -> (i32, i32) {
    %c0_i32 = arith.constant 0 : i32
    %c0_i32_0 = arith.constant 0 : i32
    %c0_i32_1 = arith.constant 0 : i32
    return %c0_i32, %c0_i32_0 : i32, i32
  }
  func.func @transform_8(%arg0: i32, %arg1: i32) -> (i32, i32) {
    %c0_i32 = arith.constant 0 : i32
    %c0_i32_0 = arith.constant 0 : i32
    return %arg0, %c0_i32 : i32, i32
  }
  func.func @transform_9(%arg0: i32, %arg1: i32) -> (i32, i32) {
    %c0_i32 = arith.constant 0 : i32
    %c0_i32_0 = arith.constant 0 : i32
    %c0_i32_1 = arith.constant 0 : i32
    return %c0_i32, %c0_i32_0 : i32, i32
  }
  func.func @transform_10(%arg0: i32, %arg1: i32) -> (i32, i32) {
    %c0_i32 = arith.constant 0 : i32
    %c0_i32_0 = arith.constant 0 : i32
    %c0_i32_1 = arith.constant 0 : i32
    return %c0_i32, %c0_i32_0 : i32, i32
  }
  func.func @transform_11(%arg0: i32, %arg1: i32) -> (i32, i32) {
    %c0_i32 = arith.constant 0 : i32
    %c0_i32_0 = arith.constant 0 : i32
    return %arg0, %c0_i32 : i32, i32
  }
}

</mosaic_0001>

<llo_original>
// kernel: tpu_custom_call.1
$region0: #{tpu_custom_call.1}
  #allocation0 [shape = 'u32[]', space=smem, size = 0x4, offset = 0x4, fixed_abs, tag = 'smem constant byte address 0x4 - core index']
  #allocation1 [shape = 'u32[144,128]{1,0:T(1,128)}', space=vmem, size = 0x12000, scoped, tag = 'internal scratch']
  #allocation2 [shape = 'f32[64,128]{1,0:T(8,128)}', space=vmem, size = 0x8000, scoped, tag = 'scratch operand']
  %s0 = inlined_call_operand.vmem [shape: s32[1,512], index: 0, kind: input, shape index: {}]
  %s1 = inlined_call_operand.hbm [shape: f32[512,128], index: 1, kind: input, shape index: {}]
  %s2 = inlined_call_operand.hbm [shape: f32[512,128], index: 2, kind: input, shape index: {}]
  %s3 = inlined_call_operand.hbm [shape: f32[512,128], index: 3, kind: input, shape index: {}]
  %s4 = inlined_call_operand.vmem [shape: f32[128,128], index: 4, kind: input, shape index: {}]
  %s5 = inlined_call_operand.hbm [shape: f32[128,128], index: 5, kind: input, shape index: {}]
  %s6 = inlined_call_operand.vmem [shape: f32[1,128], index: 6, kind: input, shape index: {}]
  %s7 = inlined_call_operand.vmem [shape: f32[1,128], index: 7, kind: input, shape index: {}]
  %s8 = inlined_call_operand.vmem [shape: f32[128,16], index: 8, kind: input, shape index: {}]
  %s9 = inlined_call_operand.vmem [shape: f32[16,128], index: 9, kind: input, shape index: {}]
  %s10 = inlined_call_operand.vmem [shape: f32[1,128], index: 10, kind: input, shape index: {}]
  %s11 = inlined_call_operand.hbm [shape: f32[128,128], index: 11, kind: output, shape index: {}]
  %s12 = sld [smem:[#allocation0]]
  $region101: #{tpu_custom_call.1} parent=0
    _
  %s14 = ssub.s32 1, %s12
  %s15 = scalar_select 0, %s14, %s12
  $region1: #{tpu_custom_call.1} parent=0
    #allocation3 [shape = 'u8[262144]{0}', space=vmem, size = 0x40000, scoped, tag = 'input window, operand 1']
    #allocation4 [shape = 's32[2]{0}', space=sflag, size = 0x8, scoped, tag = 'scoped memory for tpu_custom_call.1']
    #allocation5 [shape = 's32[2]{0}', space=sflag, size = 0x8, scoped, tag = 'scoped memory for tpu_custom_call.1']
    #allocation6 [shape = 'u8[262144]{0}', space=vmem, size = 0x40000, scoped, tag = 'input window, operand 2']
    #allocation7 [shape = 's32[2]{0}', space=sflag, size = 0x8, scoped, tag = 'scoped memory for tpu_custom_call.1']
    #allocation8 [shape = 'u8[262144]{0}', space=vmem, size = 0x40000, scoped, tag = 'input window, operand 3']
    #allocation9 [shape = 'u8[65536]{0}', space=vmem, size = 0x10000, scoped, tag = 'input window, operand 5, single buffered']
    #allocation10 [shape = 's32[1]{0}', space=sflag, size = 0x4, scoped, tag = 'scoped memory for tpu_custom_call.1']
    #allocation11 [shape = 'u8[65536]{0}', space=vmem, size = 0x10000, scoped, tag = 'output window, operand 0']
    %16 = vsyncpa [#allocation4], 0
    %s17 = scalar_lea.sflag [#allocation4], 1
    %18 = vsyncpa %s17, 0
    %19 = vsyncpa [#allocation7], 0
    %s20 = scalar_lea.sflag [#allocation7], 1
    %21 = vsyncpa %s20, 0
    %22 = vsyncpa [#allocation10], 0
    %23 = vsyncpa [#allocation5], 0
    %s24 = scalar_lea.sflag [#allocation5], 1
    %25 = vsyncpa %s24, 0
    loop: start=0, step=1, limit=6
    $region2: #{tpu_custom_call.1} parent=1 // loop_pre_header
      _
    $region3: #{tpu_custom_call.1} parent=1 // loop_header
      %s27 = sphi 0, %s31
      %p28 = scmp.ge.s32.totalorder %s27, 6
      %s34 = sphi 0, %s46
      %s35 = sphi 0, %s42
      %s36 = sphi 0, %s34
      %s37 = sphi 0, %s35
      %s38 = sphi 0, %s36
      %s39 = sphi 0, %s37
      %s49 = sphi 0, %s51
      %s52 = sphi 0, %s49
      %s53 = sphi 0, %s52
      %s69 = sphi 0, %s53
      %s75 = sphi 0, %s77
      %s78 = sphi 0, %s75
      %s79 = sphi 0, %s78
      %s95 = sphi 0, %s79
      %s101 = sphi 0, %s103
      %s104 = sphi 0, %s101
      %s105 = sphi 0, %s104
      %s121 = sphi 0, %s105
      %s127 = sphi 0, %s129
      %s130 = sphi 0, %s127
      %s131 = sphi 0, %s130
      %s147 = sphi 0, %s131
      %s151 = sphi 0, %s151
      %s153 = sphi 0, %s151
      %s154 = sphi 0, %s153
      %s168 = sphi 0, %s154
      %s172 = sphi 0, %s172
      %s174 = sphi 0, %s172
      %s175 = sphi 0, %s174
      %s189 = sphi 0, %s175
      %s193 = sphi 0, %s193
      %s195 = sphi 0, %s193
      %s196 = sphi 0, %s195
      %s210 = sphi 0, %s196
      %s214 = sphi 0, %s214
      %s216 = sphi 0, %s214
      %s217 = sphi 0, %s216
      %s231 = sphi 0, %s217
      %s237 = sphi 0, %s239
      %s240 = sphi 0, %s237
      %s241 = sphi 0, %s240
      %s257 = sphi 0, %s241
      %s261 = sphi 0, %s261
      %s263 = sphi 0, %s261
      %s264 = sphi 0, %s263
      %s278 = sphi 0, %s264
      %s282 = sphi 0, %s282
      %s284 = sphi 0, %s282
      %s285 = sphi 0, %s284
      %s299 = sphi 0, %s285
      %s305 = sphi 0, %s307
      %s308 = sphi 0, %s305
      %s309 = sphi 0, %s308
      %s325 = sphi 0, %s309
    $region4: #{tpu_custom_call.1} parent=1 // loop_header_branch
      %30 = sbr.rel (%p28) target = $region8
    $region5: #{tpu_custom_call.1} parent=1 // loop_body
      %s32 = ssub.s32 %s27, 1
      %s33 = ssub.s32 %s27, 2
      %s40 = sadd.s32 1, %s35
      %p41 = scmp.ge.s32.totalorder %s40, 2
      %s42 = scalar_select %p41, 0, %s40
      %s43 = sadd.s32 1, %s34
      %s44 = scalar_select %p41, %s43, %s34
      %p45 = scmp.ge.s32.totalorder %s44, 2
      %s46 = scalar_select %p45, 0, %s44
      %s47 = ssub.s32 %s35, %s42
      %p48 = scmp.eq.s32.totalorder %s47, 0
      %s50 = sadd.s32 %s49, 1
      %s51 = scalar_select %p48, %s49, %s50
      %p54 = pneg %p48
      %p55 = scmp.eq.s32.totalorder %s27, 3
      %p56 = por %p54, %p55
      %p57 = scmp.ne.s32.totalorder %s49, %s52
      %p58 = scmp.eq.s32.totalorder %s27, 0
      %p59 = por %p57, %p58
      %p60 = scmp.ne.s32.totalorder %s49, %s52
      %p61 = scmp.eq.s32.totalorder %s32, 3
      %p62 = por %p60, %p61
      %p63 = scmp.ne.s32.totalorder %s52, %s53
      %p64 = scmp.eq.s32.totalorder %s32, 0
      %p65 = por %p63, %p64
      %p66 = scmp.ne.s32.totalorder %s52, %s53
      %p67 = scmp.eq.s32.totalorder %s33, 3
      %p68 = por %p66, %p67
      %p70 = scmp.ne.s32.totalorder %s53, %s69
      %p71 = scmp.eq.s32.totalorder %s33, 0
      %p72 = por %p70, %p71
      %s73 = ssub.s32 %s35, %s42
      %p74 = scmp.eq.s32.totalorder %s73, 0
      %s76 = sadd.s32 %s75, 1
      %s77 = scalar_select %p74, %s75, %s76
      %p80 = pneg %p74
      %p81 = scmp.eq.s32.totalorder %s27, 3
      %p82 = por %p80, %p81
      %p83 = scmp.ne.s32.totalorder %s75, %s78
      %p84 = scmp.eq.s32.totalorder %s27, 0
      %p85 = por %p83, %p84
      %p86 = scmp.ne.s32.totalorder %s75, %s78
      %p87 = scmp.eq.s32.totalorder %s32, 3
      %p88 = por %p86, %p87
      %p89 = scmp.ne.s32.totalorder %s78, %s79
      %p90 = scmp.eq.s32.totalorder %s32, 0
      %p91 = por %p89, %p90
      %p92 = scmp.ne.s32.totalorder %s78, %s79
      %p93 = scmp.eq.s32.totalorder %s33, 3
      %p94 = por %p92, %p93
      %p96 = scmp.ne.s32.totalorder %s79, %s95
      %p97 = scmp.eq.s32.totalorder %s33, 0
      %p98 = por %p96, %p97
      %s99 = ssub.s32 %s35, %s42
      %p100 = scmp.eq.s32.totalorder %s99, 0
      %s102 = sadd.s32 %s101, 1
      %s103 = scalar_select %p100, %s101, %s102
      %p106 = pneg %p100
      %p107 = scmp.eq.s32.totalorder %s27, 3
      %p108 = por %p106, %p107
      %p109 = scmp.ne.s32.totalorder %s101, %s104
      %p110 = scmp.eq.s32.totalorder %s27, 0
      %p111 = por %p109, %p110
      %p112 = scmp.ne.s32.totalorder %s101, %s104
      %p113 = scmp.eq.s32.totalorder %s32, 3
      %p114 = por %p112, %p113
      %p115 = scmp.ne.s32.totalorder %s104, %s105
      %p116 = scmp.eq.s32.totalorder %s32, 0
      %p117 = por %p115, %p116
      %p118 = scmp.ne.s32.totalorder %s104, %s105
      %p119 = scmp.eq.s32.totalorder %s33, 3
      %p120 = por %p118, %p119
      %p122 = scmp.ne.s32.totalorder %s105, %s121
      %p123 = scmp.eq.s32.totalorder %s33, 0
      %p124 = por %p122, %p123
      %s125 = ssub.s32 %s35, %s42
      %p126 = scmp.eq.s32.totalorder %s125, 0
      %s128 = sadd.s32 %s127, 1
      %s129 = scalar_select %p126, %s127, %s128
      %p132 = pneg %p126
      %p133 = scmp.eq.s32.totalorder %s27, 3
      %p134 = por %p132, %p133
      %p135 = scmp.ne.s32.totalorder %s127, %s130
      %p136 = scmp.eq.s32.totalorder %s27, 0
      %p137 = por %p135, %p136
      %p138 = scmp.ne.s32.totalorder %s127, %s130
      %p139 = scmp.eq.s32.totalorder %s32, 3
      %p140 = por %p138, %p139
      %p141 = scmp.ne.s32.totalorder %s130, %s131
      %p142 = scmp.eq.s32.totalorder %s32, 0
      %p143 = por %p141, %p142
      %p144 = scmp.ne.s32.totalorder %s130, %s131
      %p145 = scmp.eq.s32.totalorder %s33, 3
      %p146 = por %p144, %p145
      %p148 = scmp.ne.s32.totalorder %s131, %s147
      %p149 = scmp.eq.s32.totalorder %s33, 0
      %p150 = por %p148, %p149
      %s152 = sadd.s32 %s151, 1
      %p155 = scmp.eq.s32.totalorder %s27, 3
      %p156 = scmp.ne.s32.totalorder %s151, %s153
      %p157 = scmp.eq.s32.totalorder %s27, 0
      %p158 = por %p156, %p157
      %p159 = scmp.ne.s32.totalorder %s151, %s153
      %p160 = scmp.eq.s32.totalorder %s32, 3
      %p161 = por %p159, %p160
      %p162 = scmp.ne.s32.totalorder %s153, %s154
      %p163 = scmp.eq.s32.totalorder %s32, 0
      %p164 = por %p162, %p163
      %p165 = scmp.ne.s32.totalorder %s153, %s154
      %p166 = scmp.eq.s32.totalorder %s33, 3
      %p167 = por %p165, %p166
      %p169 = scmp.ne.s32.totalorder %s154, %s168
      %p170 = scmp.eq.s32.totalorder %s33, 0
      %p171 = por %p169, %p170
      %s173 = sadd.s32 %s172, 1
      %p176 = scmp.eq.s32.totalorder %s27, 3
      %p177 = scmp.ne.s32.totalorder %s172, %s174
      %p178 = scmp.eq.s32.totalorder %s27, 0
      %p179 = por %p177, %p178
      %p180 = scmp.ne.s32.totalorder %s172, %s174
      %p181 = scmp.eq.s32.totalorder %s32, 3
      %p182 = por %p180, %p181
      %p183 = scmp.ne.s32.totalorder %s174, %s175
      %p184 = scmp.eq.s32.totalorder %s32, 0
      %p185 = por %p183, %p184
      %p186 = scmp.ne.s32.totalorder %s174, %s175
      %p187 = scmp.eq.s32.totalorder %s33, 3
      %p188 = por %p186, %p187
      %p190 = scmp.ne.s32.totalorder %s175, %s189
      %p191 = scmp.eq.s32.totalorder %s33, 0
      %p192 = por %p190, %p191
      %s194 = sadd.s32 %s193, 1
      %p197 = scmp.eq.s32.totalorder %s27, 3
      %p198 = scmp.ne.s32.totalorder %s193, %s195
      %p199 = scmp.eq.s32.totalorder %s27, 0
      %p200 = por %p198, %p199
      %p201 = scmp.ne.s32.totalorder %s193, %s195
      %p202 = scmp.eq.s32.totalorder %s32, 3
      %p203 = por %p201, %p202
      %p204 = scmp.ne.s32.totalorder %s195, %s196
      %p205 = scmp.eq.s32.totalorder %s32, 0
      %p206 = por %p204, %p205
      %p207 = scmp.ne.s32.totalorder %s195, %s196
      %p208 = scmp.eq.s32.totalorder %s33, 3
      %p209 = por %p207, %p208
      %p211 = scmp.ne.s32.totalorder %s196, %s210
      %p212 = scmp.eq.s32.totalorder %s33, 0
      %p213 = por %p211, %p212
      %s215 = sadd.s32 %s214, 1
      %p218 = scmp.eq.s32.totalorder %s27, 3
      %p219 = scmp.ne.s32.totalorder %s214, %s216
      %p220 = scmp.eq.s32.totalorder %s27, 0
      %p221 = por %p219, %p220
      %p222 = scmp.ne.s32.totalorder %s214, %s216
      %p223 = scmp.eq.s32.totalorder %s32, 3
      %p224 = por %p222, %p223
      %p225 = scmp.ne.s32.totalorder %s216, %s217
      %p226 = scmp.eq.s32.totalorder %s32, 0
      %p227 = por %p225, %p226
      %p228 = scmp.ne.s32.totalorder %s216, %s217
      %p229 = scmp.eq.s32.totalorder %s33, 3
      %p230 = por %p228, %p229
      %p232 = scmp.ne.s32.totalorder %s217, %s231
      %p233 = scmp.eq.s32.totalorder %s33, 0
      %p234 = por %p232, %p233
      %s235 = ssub.s32 %s34, %s46
      %p236 = scmp.eq.s32.totalorder %s235, 0
      %s238 = sadd.s32 %s237, 1
      %s239 = scalar_select %p236, %s237, %s238
      %p242 = pneg %p236
      %p243 = scmp.eq.s32.totalorder %s27, 3
      %p244 = por %p242, %p243
      %p245 = scmp.ne.s32.totalorder %s237, %s240
      %p246 = scmp.eq.s32.totalorder %s27, 0
      %p247 = por %p245, %p246
      %p248 = scmp.ne.s32.totalorder %s237, %s240
      %p249 = scmp.eq.s32.totalorder %s32, 3
      %p250 = por %p248, %p249
      %p251 = scmp.ne.s32.totalorder %s240, %s241
      %p252 = scmp.eq.s32.totalorder %s32, 0
      %p253 = por %p251, %p252
      %p254 = scmp.ne.s32.totalorder %s240, %s241
      %p255 = scmp.eq.s32.totalorder %s33, 3
      %p256 = por %p254, %p255
      %p258 = scmp.ne.s32.totalorder %s241, %s257
      %p259 = scmp.eq.s32.totalorder %s33, 0
      %p260 = por %p258, %p259
      %s262 = sadd.s32 %s261, 1
      %p265 = scmp.eq.s32.totalorder %s27, 3
      %p266 = scmp.ne.s32.totalorder %s261, %s263
      %p267 = scmp.eq.s32.totalorder %s27, 0
      %p268 = por %p266, %p267
      %p269 = scmp.ne.s32.totalorder %s261, %s263
      %p270 = scmp.eq.s32.totalorder %s32, 3
      %p271 = por %p269, %p270
      %p272 = scmp.ne.s32.totalorder %s263, %s264
      %p273 = scmp.eq.s32.totalorder %s32, 0
      %p274 = por %p272, %p273
      %p275 = scmp.ne.s32.totalorder %s263, %s264
      %p276 = scmp.eq.s32.totalorder %s33, 3
      %p277 = por %p275, %p276
      %p279 = scmp.ne.s32.totalorder %s264, %s278
      %p280 = scmp.eq.s32.totalorder %s33, 0
      %p281 = por %p279, %p280
      %s283 = sadd.s32 %s282, 1
      %p286 = scmp.eq.s32.totalorder %s27, 3
      %p287 = scmp.ne.s32.totalorder %s282, %s284
      %p288 = scmp.eq.s32.totalorder %s27, 0
      %p289 = por %p287, %p288
      %p290 = scmp.ne.s32.totalorder %s282, %s284
      %p291 = scmp.eq.s32.totalorder %s32, 3
      %p292 = por %p290, %p291
      %p293 = scmp.ne.s32.totalorder %s284, %s285
      %p294 = scmp.eq.s32.totalorder %s32, 0
      %p295 = por %p293, %p294
      %p296 = scmp.ne.s32.totalorder %s284, %s285
      %p297 = scmp.eq.s32.totalorder %s33, 3
      %p298 = por %p296, %p297
      %p300 = scmp.ne.s32.totalorder %s285, %s299
      %p301 = scmp.eq.s32.totalorder %s33, 0
      %p302 = por %p300, %p301
      %s303 = ssub.s32 %s34, %s46
      %p304 = scmp.eq.s32.totalorder %s303, 0
      %s306 = sadd.s32 %s305, 1
      %s307 = scalar_select %p304, %s305, %s306
      %p310 = pneg %p304
      %p311 = scmp.eq.s32.totalorder %s27, 3
      %p312 = por %p310, %p311
      %p313 = scmp.ne.s32.totalorder %s305, %s308
      %p314 = scmp.eq.s32.totalorder %s27, 0
      %p315 = por %p313, %p314
      %p316 = scmp.ne.s32.totalorder %s305, %s308
      %p317 = scmp.eq.s32.totalorder %s32, 3
      %p318 = por %p316, %p317
      %p319 = scmp.ne.s32.totalorder %s308, %s309
      %p320 = scmp.eq.s32.totalorder %s32, 0
      %p321 = por %p319, %p320
      %p322 = scmp.ne.s32.totalorder %s308, %s309
      %p323 = scmp.eq.s32.totalorder %s33, 3
      %p324 = por %p322, %p323
      %p326 = scmp.ne.s32.totalorder %s309, %s325
      %p327 = scmp.eq.s32.totalorder %s33, 0
      %p328 = por %p326, %p327
      %p329 = scmp.le.s32.totalorder 1, %s27
      %p330 = scmp.lt.s32.totalorder %s27, 5
      %p331 = pnand %p329, %p330
      %p332 = pneg %p331
      // Predicated region
      $region9: #{tpu_custom_call.1} parent=5 // pred_check
        _
      $region10: #{tpu_custom_call.1} parent=5 // pred_check_branch
        %334 = sbr.rel (%p331) target = $region12
      $region11: #{tpu_custom_call.1} parent=5 // pred_region
        %s335 = ssub.s32 %s27, 1
        // Predicated region
        $region13: #{tpu_custom_call.1} parent=11 // pred_check
          %p336 = pneg %p164
        $region14: #{tpu_custom_call.1} parent=11 // pred_check_branch
          %338 = sbr.rel (%p336) target = $region16
        $region15: #{tpu_custom_call.1} parent=11 // pred_region
          _
        $region16: #{tpu_custom_call.1} parent=11 // pred_fallthru
          _
        // Predicated region
        $region17: #{tpu_custom_call.1} parent=11 // pred_check
          %p339 = pneg %p185
        $region18: #{tpu_custom_call.1} parent=11 // pred_check_branch
          %341 = sbr.rel (%p339) target = $region20
        $region19: #{tpu_custom_call.1} parent=11 // pred_region
          %s343 = ssub.s32 2048, 2048
          %344 = vsyncadd [#allocation10], %s343
          %s345 = sshll.u32 [#allocation9], 4
          %s346 = int_to_ptr.vmem [resolvable:$true] %s345
          %351 = dma.hbm_to_vmem [thread:$0]  %s5, 2048, %s346, [#allocation10], 128, 128, 8
        $region20: #{tpu_custom_call.1} parent=11 // pred_fallthru
          _
        // Predicated region
        $region21: #{tpu_custom_call.1} parent=11 // pred_check
          %p352 = pneg %p206
        $region22: #{tpu_custom_call.1} parent=11 // pred_check_branch
          %354 = sbr.rel (%p352) target = $region24
        $region23: #{tpu_custom_call.1} parent=11 // pred_region
          _
        $region24: #{tpu_custom_call.1} parent=11 // pred_fallthru
          _
        // Predicated region
        $region25: #{tpu_custom_call.1} parent=11 // pred_check
          %p355 = pneg %p227
        $region26: #{tpu_custom_call.1} parent=11 // pred_check_branch
          %357 = sbr.rel (%p355) target = $region28
        $region27: #{tpu_custom_call.1} parent=11 // pred_region
          _
        $region28: #{tpu_custom_call.1} parent=11 // pred_fallthru
          _
        // Predicated region
        $region29: #{tpu_custom_call.1} parent=11 // pred_check
          %p358 = pneg %p274
        $region30: #{tpu_custom_call.1} parent=11 // pred_check_branch
          %360 = sbr.rel (%p358) target = $region32
        $region31: #{tpu_custom_call.1} parent=11 // pred_region
          _
        $region32: #{tpu_custom_call.1} parent=11 // pred_fallthru
          _
        // Predicated region
        $region33: #{tpu_custom_call.1} parent=11 // pred_check
          %p361 = pneg %p295
        $region34: #{tpu_custom_call.1} parent=11 // pred_check_branch
          %363 = sbr.rel (%p361) target = $region36
        $region35: #{tpu_custom_call.1} parent=11 // pred_region
          _
        $region36: #{tpu_custom_call.1} parent=11 // pred_fallthru
          _
      $region12: #{tpu_custom_call.1} parent=5 // pred_fallthru
        _
      %p364 = scmp.lt.s32.totalorder %s27, 4
      // Predicated region
      $region37: #{tpu_custom_call.1} parent=5 // pred_check
        %p365 = pneg %p364
      $region38: #{tpu_custom_call.1} parent=5 // pred_check_branch
        %367 = sbr.rel (%p365) target = $region40
      $region39: #{tpu_custom_call.1} parent=5 // pred_region
        // Predicated region
        $region41: #{tpu_custom_call.1} parent=39 // pred_check
          %p368 = pneg %p59
        $region42: #{tpu_custom_call.1} parent=39 // pred_check_branch
          %370 = sbr.rel (%p368) target = $region44
        $region43: #{tpu_custom_call.1} parent=39 // pred_region
          %s371 = smul.u32 2, %s35
          %p372 = scmp.lt.s32.totalorder %s371, 3
          %s373 = scalar_select %p372, %s371, 3
          %s374 = scalar_lea.vmem %s0, %s373
          %s375 = smul.u32 2, %s35
        $region44: #{tpu_custom_call.1} parent=39 // pred_fallthru
          _
        // Predicated region
        $region45: #{tpu_custom_call.1} parent=39 // pred_check
          %p376 = pneg %p85
        $region46: #{tpu_custom_call.1} parent=39 // pred_check_branch
          %378 = sbr.rel (%p376) target = $region48
        $region47: #{tpu_custom_call.1} parent=39 // pred_region
          %s379 = sand.u32 %s75, 1
          %s380 = scalar_lea.sflag [#allocation4], %s379
          %s381 = sand.u32 %s75, 1
          %s382 = smul.addr %s381, 256
          %s383 = scalar_lea.vmem [#allocation3], %s382
          %s384 = smul.u32 32, %s35
          %s386 = ssub.s32 4096, 4096
          %387 = vsyncadd %s380, %s386
          %s388 = smul.addr %s384, 128
          %s389 = scalar_lea.hbm %s1, %s388
          %s390 = sshll.u32 %s383, 4
          %s391 = int_to_ptr.vmem [resolvable:$true] %s390
          %396 = dma.hbm_to_vmem [thread:$0]  %s389, 4096, %s391, %s380, 128, 128, 8
        $region48: #{tpu_custom_call.1} parent=39 // pred_fallthru
          _
        // Predicated region
        $region49: #{tpu_custom_call.1} parent=39 // pred_check
          %p397 = pneg %p111
        $region50: #{tpu_custom_call.1} parent=39 // pred_check_branch
          %399 = sbr.rel (%p397) target = $region52
        $region51: #{tpu_custom_call.1} parent=39 // pred_region
          %s400 = sand.u32 %s27, 1
          %s401 = scalar_lea.sflag [#allocation7], %s400
          %s402 = sand.u32 %s101, 1
          %s403 = smul.addr %s402, 256
          %s404 = scalar_lea.vmem [#allocation6], %s403
          %s405 = smul.u32 32, %s35
          %s407 = ssub.s32 4096, 4096
          %408 = vsyncadd %s401, %s407
          %s409 = smul.addr %s405, 128
          %s410 = scalar_lea.hbm %s2, %s409
          %s411 = sshll.u32 %s404, 4
          %s412 = int_to_ptr.vmem [resolvable:$true] %s411
          %417 = dma.hbm_to_vmem [thread:$0]  %s410, 4096, %s412, %s401, 128, 128, 8
        $region52: #{tpu_custom_call.1} parent=39 // pred_fallthru
          _
        // Predicated region
        $region53: #{tpu_custom_call.1} parent=39 // pred_check
          %p418 = pneg %p137
        $region54: #{tpu_custom_call.1} parent=39 // pred_check_branch
          %420 = sbr.rel (%p418) target = $region56
        $region55: #{tpu_custom_call.1} parent=39 // pred_region
          %s421 = sand.u32 %s27, 1
          %s422 = scalar_lea.sflag [#allocation7], %s421
          %s423 = sand.u32 %s127, 1
          %s424 = smul.addr %s423, 256
          %s425 = scalar_lea.vmem [#allocation8], %s424
          %s426 = smul.u32 32, %s35
          %s428 = ssub.s32 4096, 4096
          %429 = vsyncadd %s422, %s428
          %s430 = smul.addr %s426, 128
          %s431 = scalar_lea.hbm %s3, %s430
          %s432 = sshll.u32 %s425, 4
          %s433 = int_to_ptr.vmem [resolvable:$true] %s432
          %438 = dma.hbm_to_vmem [thread:$0]  %s431, 4096, %s433, %s422, 128, 128, 8
        $region56: #{tpu_custom_call.1} parent=39 // pred_fallthru
          _
        // Predicated region
        $region57: #{tpu_custom_call.1} parent=39 // pred_check
          %p439 = pneg %p247
        $region58: #{tpu_custom_call.1} parent=39 // pred_check_branch
          %441 = sbr.rel (%p439) target = $region60
        $region59: #{tpu_custom_call.1} parent=39 // pred_region
          %s442 = smul.u32 8, %s34
          %p443 = scmp.lt.s32.totalorder %s442, 15
          %s444 = scalar_select %p443, %s442, 15
          %s445 = smul.addr %s444, 8
          %s446 = scalar_lea.vmem %s8, %s445
          %s447 = smul.u32 8, %s34
        $region60: #{tpu_custom_call.1} parent=39 // pred_fallthru
          _
      $region40: #{tpu_custom_call.1} parent=5 // pred_fallthru
        _
      %p448 = scmp.le.s32.totalorder 1, %s27
      %p449 = scmp.lt.s32.totalorder %s27, 5
      %p450 = pnand %p448, %p449
      %p451 = pneg %p450
      // Predicated region
      $region61: #{tpu_custom_call.1} parent=5 // pred_check
        _
      $region62: #{tpu_custom_call.1} parent=5 // pred_check_branch
        %453 = sbr.rel (%p450) target = $region64
      $region63: #{tpu_custom_call.1} parent=5 // pred_region
        %s454 = ssub.s32 %s27, 1
        %s455 = sand.u32 %s78, 1
        %s456 = scalar_lea.sflag [#allocation4], %s455
        %s457 = sand.u32 %s78, 1
        %s458 = smul.addr %s457, 256
        %s459 = scalar_lea.vmem [#allocation3], %s458
        // Predicated region
        $region65: #{tpu_custom_call.1} parent=63 // pred_check
          %p460 = pneg %p91
        $region66: #{tpu_custom_call.1} parent=63 // pred_check_branch
          %462 = sbr.rel (%p460) target = $region68
        $region67: #{tpu_custom_call.1} parent=63 // pred_region
          %463 = dma.done %s456, 4096
        $region68: #{tpu_custom_call.1} parent=63 // pred_fallthru
          _
        %s464 = sand.u32 %s32, 1
        %s465 = scalar_lea.sflag [#allocation7], %s464
        %s466 = sand.u32 %s104, 1
        %s467 = smul.addr %s466, 256
        %s468 = scalar_lea.vmem [#allocation6], %s467
        // Predicated region
        $region69: #{tpu_custom_call.1} parent=63 // pred_check
          %p469 = pneg %p117
        $region70: #{tpu_custom_call.1} parent=63 // pred_check_branch
          %471 = sbr.rel (%p469) target = $region72
        $region71: #{tpu_custom_call.1} parent=63 // pred_region
          %472 = dma.done %s465, 4096
        $region72: #{tpu_custom_call.1} parent=63 // pred_fallthru
          _
        %s473 = sand.u32 %s32, 1
        %s474 = scalar_lea.sflag [#allocation7], %s473
        %s475 = sand.u32 %s130, 1
        %s476 = smul.addr %s475, 256
        %s477 = scalar_lea.vmem [#allocation8], %s476
        // Predicated region
        $region73: #{tpu_custom_call.1} parent=63 // pred_check
          %p478 = pneg %p143
        $region74: #{tpu_custom_call.1} parent=63 // pred_check_branch
          %480 = sbr.rel (%p478) target = $region76
        $region75: #{tpu_custom_call.1} parent=63 // pred_region
          %481 = dma.done %s474, 4096
        $region76: #{tpu_custom_call.1} parent=63 // pred_fallthru
          _
        // Predicated region
        $region77: #{tpu_custom_call.1} parent=63 // pred_check
          %p482 = pneg %p185
        $region78: #{tpu_custom_call.1} parent=63 // pred_check_branch
          %484 = sbr.rel (%p482) target = $region80
        $region79: #{tpu_custom_call.1} parent=63 // pred_region
          %485 = dma.done [#allocation10], 2048
        $region80: #{tpu_custom_call.1} parent=63 // pred_fallthru
          _
        %s486 = smul.u32 2, %s37
        %p487 = scmp.lt.s32.totalorder %s486, 3
        %s488 = scalar_select %p487, %s486, 3
        %s489 = scalar_lea.vmem %s0, %s488
        %p490 = pneg %p65
        %p491 = pneg %p62
        %s492 = sand.u32 %s78, 1
        %s493 = scalar_lea.sflag [#allocation4], %s492
        %s494 = sand.u32 %s78, 1
        %s495 = smul.addr %s494, 256
        %s496 = scalar_lea.vmem [#allocation3], %s495
        %p497 = pneg %p91
        %p498 = pneg %p88
        %s499 = sand.u32 %s32, 1
        %s500 = scalar_lea.sflag [#allocation7], %s499
        %s501 = sand.u32 %s104, 1
        %s502 = smul.addr %s501, 256
        %s503 = scalar_lea.vmem [#allocation6], %s502
        %p504 = pneg %p117
        %p505 = pneg %p114
        %s506 = sand.u32 %s32, 1
        %s507 = scalar_lea.sflag [#allocation7], %s506
        %s508 = sand.u32 %s130, 1
        %s509 = smul.addr %s508, 256
        %s510 = scalar_lea.vmem [#allocation8], %s509
        %p511 = pneg %p143
        %p512 = pneg %p140
        %p513 = pneg %p164
        %p514 = pneg %p161
        %p515 = pneg %p185
        %p516 = pneg %p182
        %p517 = pneg %p206
        %p518 = pneg %p203
        %p519 = pneg %p227
        %p520 = pneg %p224
        %s521 = smul.u32 8, %s36
        %p522 = scmp.lt.s32.totalorder %s521, 15
        %s523 = scalar_select %p522, %s521, 15
        %s524 = smul.addr %s523, 8
        %s525 = scalar_lea.vmem %s8, %s524
        %p526 = pneg %p253
        %p527 = pneg %p250
        %p528 = pneg %p274
        %p529 = pneg %p271
        %p530 = pneg %p295
        %p531 = pneg %p292
        %p532 = pneg %p321
        %p533 = pneg %p318
        %s534 = sand.u32 %s308, 1
        %s535 = scalar_lea.sflag [#allocation5], %s534
        %s536 = sand.u32 %s308, 1
        %s537 = smul.addr %s536, 64
        %s538 = scalar_lea.vmem [#allocation11], %s537
        %s539 = smul.u32 2, %s37
        %p540 = scmp.lt.s32.totalorder %s539, 3
        %s541 = scalar_select %p540, %s539, 3
        %s542 = scalar_lea.vmem %s0, %s541
        %s543 = smul.u32 2, %s37
        %s544 = smul.u32 32, %s37
        %s545 = smul.u32 32, %s37
        %s546 = smul.u32 32, %s37
        %s547 = smul.u32 8, %s36
        %p548 = scmp.lt.s32.totalorder %s547, 15
        %s549 = scalar_select %p548, %s547, 15
        %s550 = smul.addr %s549, 8
        %s551 = scalar_lea.vmem %s8, %s550
        %s552 = smul.u32 8, %s36
        %s553 = smul.u32 8, %s36
        %p554 = scmp.eq.s32.totalorder %s37, 0
        // Predicated region
        $region81: #{tpu_custom_call.1} parent=63 // pred_check
          %p555 = pneg %p554
        $region82: #{tpu_custom_call.1} parent=63 // pred_check_branch
          %557 = sbr.rel (%p555) target = $region84
        $region83: #{tpu_custom_call.1} parent=63 // pred_region
          %558 = vst [vmem:[#allocation2] sm:$0xff] 0.0
          %559 = vst [vmem:[#allocation2 + $0x8] sm:$0xff] 0.0
          %560 = vst [vmem:[#allocation2 + $0x10] sm:$0xff] 0.0
          %561 = vst [vmem:[#allocation2 + $0x18] sm:$0xff] 0.0
          %562 = vst [vmem:[#allocation2 + $0x20] sm:$0xff] 0.0
          %563 = vst [vmem:[#allocation2 + $0x28] sm:$0xff] 0.0
          %564 = vst [vmem:[#allocation2 + $0x30] sm:$0xff] 0.0
          %565 = vst [vmem:[#allocation2 + $0x38] sm:$0xff] 0.0
        $region84: #{tpu_custom_call.1} parent=63 // pred_fallthru
          _
        %v566 = vld [vmem:[%s477] sm:$0xff]
        %v567 = vld [vmem:[%s477 + $0x8] sm:$0xff]
        %v568 = vld [vmem:[%s477 + $0x10] sm:$0xff]
        %v569 = vld [vmem:[%s477 + $0x18] sm:$0xff]
        %v570 = vld [vmem:[%s477 + $0x20] sm:$0xff]
        %v571 = vld [vmem:[%s477 + $0x28] sm:$0xff]
        %v572 = vld [vmem:[%s477 + $0x30] sm:$0xff]
        %v573 = vld [vmem:[%s477 + $0x38] sm:$0xff]
        %v574 = vld [vmem:[%s477 + $0x40] sm:$0xff]
        %v575 = vld [vmem:[%s477 + $0x48] sm:$0xff]
        %v576 = vld [vmem:[%s477 + $0x50] sm:$0xff]
        %v577 = vld [vmem:[%s477 + $0x58] sm:$0xff]
        %v578 = vld [vmem:[%s477 + $0x60] sm:$0xff]
        %v579 = vld [vmem:[%s477 + $0x68] sm:$0xff]
        %v580 = vld [vmem:[%s477 + $0x70] sm:$0xff]
        %v581 = vld [vmem:[%s477 + $0x78] sm:$0xff]
        %v582 = vld [vmem:[%s477 + $0x80] sm:$0xff]
        %v583 = vld [vmem:[%s477 + $0x88] sm:$0xff]
        %v584 = vld [vmem:[%s477 + $0x90] sm:$0xff]
        %v585 = vld [vmem:[%s477 + $0x98] sm:$0xff]
        %v586 = vld [vmem:[%s477 + $0xa0] sm:$0xff]
        %v587 = vld [vmem:[%s477 + $0xa8] sm:$0xff]
        %v588 = vld [vmem:[%s477 + $0xb0] sm:$0xff]
        %v589 = vld [vmem:[%s477 + $0xb8] sm:$0xff]
        %v590 = vld [vmem:[%s477 + $0xc0] sm:$0xff]
        %v591 = vld [vmem:[%s477 + $0xc8] sm:$0xff]
        %v592 = vld [vmem:[%s477 + $0xd0] sm:$0xff]
        %v593 = vld [vmem:[%s477 + $0xd8] sm:$0xff]
        %v594 = vld [vmem:[%s477 + $0xe0] sm:$0xff]
        %v595 = vld [vmem:[%s477 + $0xe8] sm:$0xff]
        %v596 = vld [vmem:[%s477 + $0xf0] sm:$0xff]
        %v597 = vld [vmem:[%s477 + $0xf8] sm:$0xff]
        %v598 = vld [vmem:[%s459] sm:$0xff]
        %v599 = vld [vmem:[%s459 + $0x8] sm:$0xff]
        %v600 = vld [vmem:[%s459 + $0x10] sm:$0xff]
        %v601 = vld [vmem:[%s459 + $0x18] sm:$0xff]
        %v602 = vld [vmem:[%s459 + $0x20] sm:$0xff]
        %v603 = vld [vmem:[%s459 + $0x28] sm:$0xff]
        %v604 = vld [vmem:[%s459 + $0x30] sm:$0xff]
        %v605 = vld [vmem:[%s459 + $0x38] sm:$0xff]
        %v606 = vld [vmem:[%s459 + $0x40] sm:$0xff]
        %v607 = vld [vmem:[%s459 + $0x48] sm:$0xff]
        %v608 = vld [vmem:[%s459 + $0x50] sm:$0xff]
        %v609 = vld [vmem:[%s459 + $0x58] sm:$0xff]
        %v610 = vld [vmem:[%s459 + $0x60] sm:$0xff]
        %v611 = vld [vmem:[%s459 + $0x68] sm:$0xff]
        %v612 = vld [vmem:[%s459 + $0x70] sm:$0xff]
        %v613 = vld [vmem:[%s459 + $0x78] sm:$0xff]
        %v614 = vld [vmem:[%s459 + $0x80] sm:$0xff]
        %v615 = vld [vmem:[%s459 + $0x88] sm:$0xff]
        %v616 = vld [vmem:[%s459 + $0x90] sm:$0xff]
        %v617 = vld [vmem:[%s459 + $0x98] sm:$0xff]
        %v618 = vld [vmem:[%s459 + $0xa0] sm:$0xff]
        %v619 = vld [vmem:[%s459 + $0xa8] sm:$0xff]
        %v620 = vld [vmem:[%s459 + $0xb0] sm:$0xff]
        %v621 = vld [vmem:[%s459 + $0xb8] sm:$0xff]
        %v622 = vld [vmem:[%s459 + $0xc0] sm:$0xff]
        %v623 = vld [vmem:[%s459 + $0xc8] sm:$0xff]
        %v624 = vld [vmem:[%s459 + $0xd0] sm:$0xff]
        %v625 = vld [vmem:[%s459 + $0xd8] sm:$0xff]
        %v626 = vld [vmem:[%s459 + $0xe0] sm:$0xff]
        %v627 = vld [vmem:[%s459 + $0xe8] sm:$0xff]
        %v628 = vld [vmem:[%s459 + $0xf0] sm:$0xff]
        %v629 = vld [vmem:[%s459 + $0xf8] sm:$0xff]
        %v630 = vld [vmem:[%s4] sm:$0xff]
        %v631 = vld [vmem:[%s4 + $0x8] sm:$0xff]
        %v632 = vld [vmem:[%s4 + $0x10] sm:$0xff]
        %v633 = vld [vmem:[%s4 + $0x18] sm:$0xff]
        %v634 = vld [vmem:[%s4 + $0x20] sm:$0xff]
        %v635 = vld [vmem:[%s4 + $0x28] sm:$0xff]
        %v636 = vld [vmem:[%s4 + $0x30] sm:$0xff]
        %v637 = vld [vmem:[%s4 + $0x38] sm:$0xff]
        %v638 = vld [vmem:[%s4 + $0x40] sm:$0xff]
        %v639 = vld [vmem:[%s4 + $0x48] sm:$0xff]
        %v640 = vld [vmem:[%s4 + $0x50] sm:$0xff]
        %v641 = vld [vmem:[%s4 + $0x58] sm:$0xff]
        %v642 = vld [vmem:[%s4 + $0x60] sm:$0xff]
        %v643 = vld [vmem:[%s4 + $0x68] sm:$0xff]
        %v644 = vld [vmem:[%s4 + $0x70] sm:$0xff]
        %v645 = vld [vmem:[%s4 + $0x78] sm:$0xff]
        %646 = vmatprep.subr.mxu0 0.0
        %647 = vmatpush1.msra.mxu0 %v630
        %648 = vmatprep.subr.mxu0 0.0
        %649 = vmatpush1.msra.mxu0 %v631
        %650 = vmatprep.subr.mxu0 0.0
        %651 = vmatpush1.msra.mxu0 %v632
        %652 = vmatprep.subr.mxu0 0.0
        %653 = vmatpush1.msra.mxu0 %v633
        %654 = vmatprep.subr.mxu0 0.0
        %655 = vmatpush1.msra.mxu0 %v634
        %656 = vmatprep.subr.mxu0 0.0
        %657 = vmatpush1.msra.mxu0 %v635
        %658 = vmatprep.subr.mxu0 0.0
        %659 = vmatpush1.msra.mxu0 %v636
        %660 = vmatprep.subr.mxu0 0.0
        %661 = vmatpush1.msra.mxu0 %v637
        %662 = vmatprep.subr.mxu0 0.0
        %663 = vmatpush1.msra.mxu0 %v638
        %664 = vmatprep.subr.mxu0 0.0
        %665 = vmatpush1.msra.mxu0 %v639
        %666 = vmatprep.subr.mxu0 0.0
        %667 = vmatpush1.msra.mxu0 %v640
        %668 = vmatprep.subr.mxu0 0.0
        %669 = vmatpush1.msra.mxu0 %v641
        %670 = vmatprep.subr.mxu0 0.0
        %671 = vmatpush1.msra.mxu0 %v642
        %672 = vmatprep.subr.mxu0 0.0
        %673 = vmatpush1.msra.mxu0 %v643
        %674 = vmatprep.subr.mxu0 0.0
        %675 = vmatpush1.msra.mxu0 %v644
        %676 = vmatprep.subr.mxu0 0.0
        %677 = vmatpush1.msra.mxu0 %v645
        %678 = vmatprep.subr.mxu0 0.0
        %679 = vmatpush1.msra.mxu0 0.0
        %680 = vmatprep.subr.mxu0 0.0
        %681 = vmatpush1.msra.mxu0 0.0
        %682 = vmatprep.subr.mxu0 0.0
        %683 = vmatpush1.msra.mxu0 0.0
        %684 = vmatprep.subr.mxu0 0.0
        %685 = vmatpush1.msra.mxu0 0.0
        %686 = vmatprep.subr.mxu0 0.0
        %687 = vmatpush1.msra.mxu0 0.0
        %688 = vmatprep.subr.mxu0 0.0
        %689 = vmatpush1.msra.mxu0 0.0
        %690 = vmatprep.subr.mxu0 0.0
        %691 = vmatpush1.msra.mxu0 0.0
        %692 = vmatprep.subr.mxu0 0.0
        %693 = vmatpush1.msra.mxu0 0.0
        %694 = vmatprep.subr.mxu0 0.0
        %695 = vmatpush1.msra.mxu0 0.0
        %696 = vmatprep.subr.mxu0 0.0
        %697 = vmatpush1.msra.mxu0 0.0
        %698 = vmatprep.subr.mxu0 0.0
        %699 = vmatpush1.msra.mxu0 0.0
        %700 = vmatprep.subr.mxu0 0.0
        %701 = vmatpush1.msra.mxu0 0.0
        %702 = vmatprep.subr.mxu0 0.0
        %703 = vmatpush1.msra.mxu0 0.0
        %704 = vmatprep.subr.mxu0 0.0
        %705 = vmatpush1.msra.mxu0 0.0
        %706 = vmatprep.subr.mxu0 0.0
        %707 = vmatpush1.msra.mxu0 0.0
        %708 = vmatprep.subr.mxu0 0.0
        %709 = vmatpush1.msra.mxu0 0.0
        %710 = vmatprep.mubr.f32.mxu0 0.0
        %711 = vmatmul.mubr.f32.gmra.mrb[0].mxu0 %v566
        %v712 = vpop.f32.mrb[0].mxu0
        %v713 = vadd.f32 0.0, %v712
        %v714 = vpop.f32.mrb[0].mxu0
        %715 = vmatprep.mubr.f32.mxu0 0.0
        %716 = vmatmul.mubr.f32.gmra.mrb[0].mxu0 %v567
        %v717 = vpop.f32.mrb[0].mxu0
        %v718 = vadd.f32 0.0, %v717
        %v719 = vpop.f32.mrb[0].mxu0
        %720 = vmatprep.mubr.f32.mxu0 0.0
        %721 = vmatmul.mubr.f32.gmra.mrb[0].mxu0 %v568
        %v722 = vpop.f32.mrb[0].mxu0
        %v723 = vadd.f32 0.0, %v722
        %v724 = vpop.f32.mrb[0].mxu0
        %725 = vmatprep.mubr.f32.mxu0 0.0
        %726 = vmatmul.mubr.f32.gmra.mrb[0].mxu0 %v569
        %v727 = vpop.f32.mrb[0].mxu0
        %v728 = vadd.f32 0.0, %v727
        %v729 = vpop.f32.mrb[0].mxu0
        %730 = vmatprep.mubr.f32.mxu0 0.0
        %731 = vmatmul.mubr.f32.gmra.mrb[0].mxu0 %v570
        %v732 = vpop.f32.mrb[0].mxu0
        %v733 = vadd.f32 0.0, %v732
        %v734 = vpop.f32.mrb[0].mxu0
        %735 = vmatprep.mubr.f32.mxu0 0.0
        %736 = vmatmul.mubr.f32.gmra.mrb[0].mxu0 %v571
        %v737 = vpop.f32.mrb[0].mxu0
        %v738 = vadd.f32 0.0, %v737
        %v739 = vpop.f32.mrb[0].mxu0
        %740 = vmatprep.mubr.f32.mxu0 0.0
        %741 = vmatmul.mubr.f32.gmra.mrb[0].mxu0 %v572
        %v742 = vpop.f32.mrb[0].mxu0
        %v743 = vadd.f32 0.0, %v742
        %v744 = vpop.f32.mrb[0].mxu0
        %745 = vmatprep.mubr.f32.mxu0 0.0
        %746 = vmatmul.mubr.f32.gmra.mrb[0].mxu0 %v573
        %v747 = vpop.f32.mrb[0].mxu0
        %v748 = vadd.f32 0.0, %v747
        %v749 = vpop.f32.mrb[0].mxu0
        %750 = vmatprep.mubr.f32.mxu0 0.0
        %751 = vmatmul.mubr.f32.gmra.mrb[0].mxu0 %v574
        %v752 = vpop.f32.mrb[0].mxu0
        %v753 = vadd.f32 0.0, %v752
        %v754 = vpop.f32.mrb[0].mxu0
        %755 = vmatprep.mubr.f32.mxu0 0.0
        %756 = vmatmul.mubr.f32.gmra.mrb[0].mxu0 %v575
        %v757 = vpop.f32.mrb[0].mxu0
        %v758 = vadd.f32 0.0, %v757
        %v759 = vpop.f32.mrb[0].mxu0
        %760 = vmatprep.mubr.f32.mxu0 0.0
        %761 = vmatmul.mubr.f32.gmra.mrb[0].mxu0 %v576
        %v762 = vpop.f32.mrb[0].mxu0
        %v763 = vadd.f32 0.0, %v762
        %v764 = vpop.f32.mrb[0].mxu0
        %765 = vmatprep.mubr.f32.mxu0 0.0
        %766 = vmatmul.mubr.f32.gmra.mrb[0].mxu0 %v577
        %v767 = vpop.f32.mrb[0].mxu0
        %v768 = vadd.f32 0.0, %v767
        %v769 = vpop.f32.mrb[0].mxu0
        %770 = vmatprep.mubr.f32.mxu0 0.0
        %771 = vmatmul.mubr.f32.gmra.mrb[0].mxu0 %v578
        %v772 = vpop.f32.mrb[0].mxu0
        %v773 = vadd.f32 0.0, %v772
        %v774 = vpop.f32.mrb[0].mxu0
        %775 = vmatprep.mubr.f32.mxu0 0.0
        %776 = vmatmul.mubr.f32.gmra.mrb[0].mxu0 %v579
        %v777 = vpop.f32.mrb[0].mxu0
        %v778 = vadd.f32 0.0, %v777
        %v779 = vpop.f32.mrb[0].mxu0
        %780 = vmatprep.mubr.f32.mxu0 0.0
        %781 = vmatmul.mubr.f32.gmra.mrb[0].mxu0 %v580
        %v782 = vpop.f32.mrb[0].mxu0
        %v783 = vadd.f32 0.0, %v782
        %v784 = vpop.f32.mrb[0].mxu0
        %785 = vmatprep.mubr.f32.mxu0 0.0
        %786 = vmatmul.mubr.f32.gmra.mrb[0].mxu0 %v581
        %v787 = vpop.f32.mrb[0].mxu0
        %v788 = vadd.f32 0.0, %v787
        %v789 = vpop.f32.mrb[0].mxu0
        %790 = vmatprep.mubr.f32.mxu0 0.0
        %791 = vmatmul.mubr.f32.gmra.mrb[0].mxu0 %v582
        %v792 = vpop.f32.mrb[0].mxu0
        %v793 = vadd.f32 0.0, %v792
        %v794 = vpop.f32.mrb[0].mxu0
        %795 = vmatprep.mubr.f32.mxu0 0.0
        %796 = vmatmul.mubr.f32.gmra.mrb[0].mxu0 %v583
        %v797 = vpop.f32.mrb[0].mxu0
        %v798 = vadd.f32 0.0, %v797
        %v799 = vpop.f32.mrb[0].mxu0
        %800 = vmatprep.mubr.f32.mxu0 0.0
        %801 = vmatmul.mubr.f32.gmra.mrb[0].mxu0 %v584
        %v802 = vpop.f32.mrb[0].mxu0
        %v803 = vadd.f32 0.0, %v802
        %v804 = vpop.f32.mrb[0].mxu0
        %805 = vmatprep.mubr.f32.mxu0 0.0
        %806 = vmatmul.mubr.f32.gmra.mrb[0].mxu0 %v585
        %v807 = vpop.f32.mrb[0].mxu0
        %v808 = vadd.f32 0.0, %v807
        %v809 = vpop.f32.mrb[0].mxu0
        %810 = vmatprep.mubr.f32.mxu0 0.0
        %811 = vmatmul.mubr.f32.gmra.mrb[0].mxu0 %v586
        %v812 = vpop.f32.mrb[0].mxu0
        %v813 = vadd.f32 0.0, %v812
        %v814 = vpop.f32.mrb[0].mxu0
        %815 = vmatprep.mubr.f32.mxu0 0.0
        %816 = vmatmul.mubr.f32.gmra.mrb[0].mxu0 %v587
        %v817 = vpop.f32.mrb[0].mxu0
        %v818 = vadd.f32 0.0, %v817
        %v819 = vpop.f32.mrb[0].mxu0
        %820 = vmatprep.mubr.f32.mxu0 0.0
        %821 = vmatmul.mubr.f32.gmra.mrb[0].mxu0 %v588
        %v822 = vpop.f32.mrb[0].mxu0
        %v823 = vadd.f32 0.0, %v822
        %v824 = vpop.f32.mrb[0].mxu0
        %825 = vmatprep.mubr.f32.mxu0 0.0
        %826 = vmatmul.mubr.f32.gmra.mrb[0].mxu0 %v589
        %v827 = vpop.f32.mrb[0].mxu0
        %v828 = vadd.f32 0.0, %v827
        %v829 = vpop.f32.mrb[0].mxu0
        %830 = vmatprep.mubr.f32.mxu0 0.0
        %831 = vmatmul.mubr.f32.gmra.mrb[0].mxu0 %v590
        %v832 = vpop.f32.mrb[0].mxu0
        %v833 = vadd.f32 0.0, %v832
        %v834 = vpop.f32.mrb[0].mxu0
        %835 = vmatprep.mubr.f32.mxu0 0.0
        %836 = vmatmul.mubr.f32.gmra.mrb[0].mxu0 %v591
        %v837 = vpop.f32.mrb[0].mxu0
        %v838 = vadd.f32 0.0, %v837
        %v839 = vpop.f32.mrb[0].mxu0
        %840 = vmatprep.mubr.f32.mxu0 0.0
        %841 = vmatmul.mubr.f32.gmra.mrb[0].mxu0 %v592
        %v842 = vpop.f32.mrb[0].mxu0
        %v843 = vadd.f32 0.0, %v842
        %v844 = vpop.f32.mrb[0].mxu0
        %845 = vmatprep.mubr.f32.mxu0 0.0
        %846 = vmatmul.mubr.f32.gmra.mrb[0].mxu0 %v593
        %v847 = vpop.f32.mrb[0].mxu0
        %v848 = vadd.f32 0.0, %v847
        %v849 = vpop.f32.mrb[0].mxu0
        %850 = vmatprep.mubr.f32.mxu0 0.0
        %851 = vmatmul.mubr.f32.gmra.mrb[0].mxu0 %v594
        %v852 = vpop.f32.mrb[0].mxu0
        %v853 = vadd.f32 0.0, %v852
        %v854 = vpop.f32.mrb[0].mxu0
        %855 = vmatprep.mubr.f32.mxu0 0.0
        %856 = vmatmul.mubr.f32.gmra.mrb[0].mxu0 %v595
        %v857 = vpop.f32.mrb[0].mxu0
        %v858 = vadd.f32 0.0, %v857
        %v859 = vpop.f32.mrb[0].mxu0
        %860 = vmatprep.mubr.f32.mxu0 0.0
        %861 = vmatmul.mubr.f32.gmra.mrb[0].mxu0 %v596
        %v862 = vpop.f32.mrb[0].mxu0
        %v863 = vadd.f32 0.0, %v862
        %v864 = vpop.f32.mrb[0].mxu0
        %865 = vmatprep.mubr.f32.mxu0 0.0
        %866 = vmatmul.mubr.f32.gmra.mrb[0].mxu0 %v597
        %v867 = vpop.f32.mrb[0].mxu0
        %v868 = vadd.f32 0.0, %v867
        %v869 = vpop.f32.mrb[0].mxu0
        %870 = vdwg.mxu0
        %v871 = vadd.f32 %v598, %v713
        %v872 = vadd.f32 %v599, %v718
        %v873 = vadd.f32 %v600, %v723
        %v874 = vadd.f32 %v601, %v728
        %v875 = vadd.f32 %v602, %v733
        %v876 = vadd.f32 %v603, %v738
        %v877 = vadd.f32 %v604, %v743
        %v878 = vadd.f32 %v605, %v748
        %v879 = vadd.f32 %v606, %v753
        %v880 = vadd.f32 %v607, %v758
        %v881 = vadd.f32 %v608, %v763
        %v882 = vadd.f32 %v609, %v768
        %v883 = vadd.f32 %v610, %v773
        %v884 = vadd.f32 %v611, %v778
        %v885 = vadd.f32 %v612, %v783
        %v886 = vadd.f32 %v613, %v788
        %v887 = vadd.f32 %v614, %v793
        %v888 = vadd.f32 %v615, %v798
        %v889 = vadd.f32 %v616, %v803
        %v890 = vadd.f32 %v617, %v808
        %v891 = vadd.f32 %v618, %v813
        %v892 = vadd.f32 %v619, %v818
        %v893 = vadd.f32 %v620, %v823
        %v894 = vadd.f32 %v621, %v828
        %v895 = vadd.f32 %v622, %v833
        %v896 = vadd.f32 %v623, %v838
        %v897 = vadd.f32 %v624, %v843
        %v898 = vadd.f32 %v625, %v848
        %v899 = vadd.f32 %v626, %v853
        %v900 = vadd.f32 %v627, %v858
        %v901 = vadd.f32 %v628, %v863
        %v902 = vadd.f32 %v629, %v868
        %v903 = vld [vmem:[%s6] sm:$0x1]
        %v905 = vlaneseq
        %v906 = vshrl.u32 %v905, 7
        %v907 = vsub.s32 0, %v906
        %v908 = vrot.slane %v903, %v907
        %v910 = vadd.f32 %v871, %v908
        %v911 = vadd.f32 %v872, %v908
        %v912 = vadd.f32 %v873, %v908
        %v913 = vadd.f32 %v874, %v908
        %v914 = vadd.f32 %v875, %v908
        %v915 = vadd.f32 %v876, %v908
        %v916 = vadd.f32 %v877, %v908
        %v917 = vadd.f32 %v878, %v908
        %v918 = vadd.f32 %v879, %v908
        %v919 = vadd.f32 %v880, %v908
        %v920 = vadd.f32 %v881, %v908
        %v921 = vadd.f32 %v882, %v908
        %v922 = vadd.f32 %v883, %v908
        %v923 = vadd.f32 %v884, %v908
        %v924 = vadd.f32 %v885, %v908
        %v925 = vadd.f32 %v886, %v908
        %v926 = vadd.f32 %v887, %v908
        %v927 = vadd.f32 %v888, %v908
        %v928 = vadd.f32 %v889, %v908
        %v929 = vadd.f32 %v890, %v908
        %v930 = vadd.f32 %v891, %v908
        %v931 = vadd.f32 %v892, %v908
        %v932 = vadd.f32 %v893, %v908
        %v933 = vadd.f32 %v894, %v908
        %v934 = vadd.f32 %v895, %v908
        %v935 = vadd.f32 %v896, %v908
        %v936 = vadd.f32 %v897, %v908
        %v937 = vadd.f32 %v898, %v908
        %v938 = vadd.f32 %v899, %v908
        %v939 = vadd.f32 %v900, %v908
        %v940 = vadd.f32 %v901, %v908
        %v941 = vadd.f32 %v902, %v908
        %v942 = vld [vmem:[%s468] sm:$0xff]
        %v943 = vld [vmem:[%s468 + $0x8] sm:$0xff]
        %v944 = vld [vmem:[%s468 + $0x10] sm:$0xff]
        %v945 = vld [vmem:[%s468 + $0x18] sm:$0xff]
        %v946 = vld [vmem:[%s468 + $0x20] sm:$0xff]
        %v947 = vld [vmem:[%s468 + $0x28] sm:$0xff]
        %v948 = vld [vmem:[%s468 + $0x30] sm:$0xff]
        %v949 = vld [vmem:[%s468 + $0x38] sm:$0xff]
        %v950 = vld [vmem:[%s468 + $0x40] sm:$0xff]
        %v951 = vld [vmem:[%s468 + $0x48] sm:$0xff]
        %v952 = vld [vmem:[%s468 + $0x50] sm:$0xff]
        %v953 = vld [vmem:[%s468 + $0x58] sm:$0xff]
        %v954 = vld [vmem:[%s468 + $0x60] sm:$0xff]
        %v955 = vld [vmem:[%s468 + $0x68] sm:$0xff]
        %v956 = vld [vmem:[%s468 + $0x70] sm:$0xff]
        %v957 = vld [vmem:[%s468 + $0x78] sm:$0xff]
        %v958 = vld [vmem:[%s468 + $0x80] sm:$0xff]
        %v959 = vld [vmem:[%s468 + $0x88] sm:$0xff]
        %v960 = vld [vmem:[%s468 + $0x90] sm:$0xff]
        %v961 = vld [vmem:[%s468 + $0x98] sm:$0xff]
        %v962 = vld [vmem:[%s468 + $0xa0] sm:$0xff]
        %v963 = vld [vmem:[%s468 + $0xa8] sm:$0xff]
        %v964 = vld [vmem:[%s468 + $0xb0] sm:$0xff]
        %v965 = vld [vmem:[%s468 + $0xb8] sm:$0xff]
        %v966 = vld [vmem:[%s468 + $0xc0] sm:$0xff]
        %v967 = vld [vmem:[%s468 + $0xc8] sm:$0xff]
        %v968 = vld [vmem:[%s468 + $0xd0] sm:$0xff]
        %v969 = vld [vmem:[%s468 + $0xd8] sm:$0xff]
        %v970 = vld [vmem:[%s468 + $0xe0] sm:$0xff]
        %v971 = vld [vmem:[%s468 + $0xe8] sm:$0xff]
        %v972 = vld [vmem:[%s468 + $0xf0] sm:$0xff]
        %v973 = vld [vmem:[%s468 + $0xf8] sm:$0xff]
        %v974 = vld [vmem:[#allocation9] sm:$0xff]
        %v975 = vld [vmem:[#allocation9 + $0x8] sm:$0xff]
        %v976 = vld [vmem:[#allocation9 + $0x10] sm:$0xff]
        %v977 = vld [vmem:[#allocation9 + $0x18] sm:$0xff]
        %v978 = vld [vmem:[#allocation9 + $0x20] sm:$0xff]
        %v979 = vld [vmem:[#allocation9 + $0x28] sm:$0xff]
        %v980 = vld [vmem:[#allocation9 + $0x30] sm:$0xff]
        %v981 = vld [vmem:[#allocation9 + $0x38] sm:$0xff]
        %v982 = vld [vmem:[#allocation9 + $0x40] sm:$0xff]
        %v983 = vld [vmem:[#allocation9 + $0x48] sm:$0xff]
        %v984 = vld [vmem:[#allocation9 + $0x50] sm:$0xff]
        %v985 = vld [vmem:[#allocation9 + $0x58] sm:$0xff]
        %v986 = vld [vmem:[#allocation9 + $0x60] sm:$0xff]
        %v987 = vld [vmem:[#allocation9 + $0x68] sm:$0xff]
        %v988 = vld [vmem:[#allocation9 + $0x70] sm:$0xff]
        %v989 = vld [vmem:[#allocation9 + $0x78] sm:$0xff]
        %990 = vmatprep.subr.mxu0 0.0
        %991 = vmatpush1.msra.mxu0 %v974
        %992 = vmatprep.subr.mxu0 0.0
        %993 = vmatpush1.msra.mxu0 %v975
        %994 = vmatprep.subr.mxu0 0.0
        %995 = vmatpush1.msra.mxu0 %v976
        %996 = vmatprep.subr.mxu0 0.0
        %997 = vmatpush1.msra.mxu0 %v977
        %998 = vmatprep.subr.mxu0 0.0
        %999 = vmatpush1.msra.mxu0 %v978
        %1000 = vmatprep.subr.mxu0 0.0
        %1001 = vmatpush1.msra.mxu0 %v979
        %1002 = vmatprep.subr.mxu0 0.0
        %1003 = vmatpush1.msra.mxu0 %v980
        %1004 = vmatprep.subr.mxu0 0.0
        %1005 = vmatpush1.msra.mxu0 %v981
        %1006 = vmatprep.subr.mxu0 0.0
        %1007 = vmatpush1.msra.mxu0 %v982
        %1008 = vmatprep.subr.mxu0 0.0
        %1009 = vmatpush1.msra.mxu0 %v983
        %1010 = vmatprep.subr.mxu0 0.0
        %1011 = vmatpush1.msra.mxu0 %v984
        %1012 = vmatprep.subr.mxu0 0.0
        %1013 = vmatpush1.msra.mxu0 %v985
        %1014 = vmatprep.subr.mxu0 0.0
        %1015 = vmatpush1.msra.mxu0 %v986
        %1016 = vmatprep.subr.mxu0 0.0
        %1017 = vmatpush1.msra.mxu0 %v987
        %1018 = vmatprep.subr.mxu0 0.0
        %1019 = vmatpush1.msra.mxu0 %v988
        %1020 = vmatprep.subr.mxu0 0.0
        %1021 = vmatpush1.msra.mxu0 %v989
        %1022 = vmatprep.subr.mxu0 0.0
        %1023 = vmatpush1.msra.mxu0 0.0
        %1024 = vmatprep.subr.mxu0 0.0
        %1025 = vmatpush1.msra.mxu0 0.0
        %1026 = vmatprep.subr.mxu0 0.0
        %1027 = vmatpush1.msra.mxu0 0.0
        %1028 = vmatprep.subr.mxu0 0.0
        %1029 = vmatpush1.msra.mxu0 0.0
        %1030 = vmatprep.subr.mxu0 0.0
        %1031 = vmatpush1.msra.mxu0 0.0
        %1032 = vmatprep.subr.mxu0 0.0
        %1033 = vmatpush1.msra.mxu0 0.0
        %1034 = vmatprep.subr.mxu0 0.0
        %1035 = vmatpush1.msra.mxu0 0.0
        %1036 = vmatprep.subr.mxu0 0.0
        %1037 = vmatpush1.msra.mxu0 0.0
        %1038 = vmatprep.subr.mxu0 0.0
        %1039 = vmatpush1.msra.mxu0 0.0
        %1040 = vmatprep.subr.mxu0 0.0
        %1041 = vmatpush1.msra.mxu0 0.0
        %1042 = vmatprep.subr.mxu0 0.0
        %1043 = vmatpush1.msra.mxu0 0.0
        %1044 = vmatprep.subr.mxu0 0.0
        %1045 = vmatpush1.msra.mxu0 0.0
        %1046 = vmatprep.subr.mxu0 0.0
        %1047 = vmatpush1.msra.mxu0 0.0
        %1048 = vmatprep.subr.mxu0 0.0
        %1049 = vmatpush1.msra.mxu0 0.0
        %1050 = vmatprep.subr.mxu0 0.0
        %1051 = vmatpush1.msra.mxu0 0.0
        %1052 = vmatprep.subr.mxu0 0.0
        %1053 = vmatpush1.msra.mxu0 0.0
        %1054 = vmatprep.mubr.f32.mxu0 0.0
        %1055 = vmatmul.mubr.f32.gmra.mrb[0].mxu0 %v566
        %v1056 = vpop.f32.mrb[0].mxu0
        %v1057 = vadd.f32 0.0, %v1056
        %v1058 = vpop.f32.mrb[0].mxu0
        %1059 = vmatprep.mubr.f32.mxu0 0.0
        %1060 = vmatmul.mubr.f32.gmra.mrb[0].mxu0 %v567
        %v1061 = vpop.f32.mrb[0].mxu0
        %v1062 = vadd.f32 0.0, %v1061
        %v1063 = vpop.f32.mrb[0].mxu0
        %1064 = vmatprep.mubr.f32.mxu0 0.0
        %1065 = vmatmul.mubr.f32.gmra.mrb[0].mxu0 %v568
        %v1066 = vpop.f32.mrb[0].mxu0
        %v1067 = vadd.f32 0.0, %v1066
        %v1068 = vpop.f32.mrb[0].mxu0
        %1069 = vmatprep.mubr.f32.mxu0 0.0
        %1070 = vmatmul.mubr.f32.gmra.mrb[0].mxu0 %v569
        %v1071 = vpop.f32.mrb[0].mxu0
        %v1072 = vadd.f32 0.0, %v1071
        %v1073 = vpop.f32.mrb[0].mxu0
        %1074 = vmatprep.mubr.f32.mxu0 0.0
        %1075 = vmatmul.mubr.f32.gmra.mrb[0].mxu0 %v570
        %v1076 = vpop.f32.mrb[0].mxu0
        %v1077 = vadd.f32 0.0, %v1076
        %v1078 = vpop.f32.mrb[0].mxu0
        %1079 = vmatprep.mubr.f32.mxu0 0.0
        %1080 = vmatmul.mubr.f32.gmra.mrb[0].mxu0 %v571
        %v1081 = vpop.f32.mrb[0].mxu0
        %v1082 = vadd.f32 0.0, %v1081
        %v1083 = vpop.f32.mrb[0].mxu0
        %1084 = vmatprep.mubr.f32.mxu0 0.0
        %1085 = vmatmul.mubr.f32.gmra.mrb[0].mxu0 %v572
        %v1086 = vpop.f32.mrb[0].mxu0
        %v1087 = vadd.f32 0.0, %v1086
        %v1088 = vpop.f32.mrb[0].mxu0
        %1089 = vmatprep.mubr.f32.mxu0 0.0
        %1090 = vmatmul.mubr.f32.gmra.mrb[0].mxu0 %v573
        %v1091 = vpop.f32.mrb[0].mxu0
        %v1092 = vadd.f32 0.0, %v1091
        %v1093 = vpop.f32.mrb[0].mxu0
        %1094 = vmatprep.mubr.f32.mxu0 0.0
        %1095 = vmatmul.mubr.f32.gmra.mrb[0].mxu0 %v574
        %v1096 = vpop.f32.mrb[0].mxu0
        %v1097 = vadd.f32 0.0, %v1096
        %v1098 = vpop.f32.mrb[0].mxu0
        %1099 = vmatprep.mubr.f32.mxu0 0.0
        %1100 = vmatmul.mubr.f32.gmra.mrb[0].mxu0 %v575
        %v1101 = vpop.f32.mrb[0].mxu0
        %v1102 = vadd.f32 0.0, %v1101
        %v1103 = vpop.f32.mrb[0].mxu0
        %1104 = vmatprep.mubr.f32.mxu0 0.0
        %1105 = vmatmul.mubr.f32.gmra.mrb[0].mxu0 %v576
        %v1106 = vpop.f32.mrb[0].mxu0
        %v1107 = vadd.f32 0.0, %v1106
        %v1108 = vpop.f32.mrb[0].mxu0
        %1109 = vmatprep.mubr.f32.mxu0 0.0
        %1110 = vmatmul.mubr.f32.gmra.mrb[0].mxu0 %v577
        %v1111 = vpop.f32.mrb[0].mxu0
        %v1112 = vadd.f32 0.0, %v1111
        %v1113 = vpop.f32.mrb[0].mxu0
        %1114 = vmatprep.mubr.f32.mxu0 0.0
        %1115 = vmatmul.mubr.f32.gmra.mrb[0].mxu0 %v578
        %v1116 = vpop.f32.mrb[0].mxu0
        %v1117 = vadd.f32 0.0, %v1116
        %v1118 = vpop.f32.mrb[0].mxu0
        %1119 = vmatprep.mubr.f32.mxu0 0.0
        %1120 = vmatmul.mubr.f32.gmra.mrb[0].mxu0 %v579
        %v1121 = vpop.f32.mrb[0].mxu0
        %v1122 = vadd.f32 0.0, %v1121
        %v1123 = vpop.f32.mrb[0].mxu0
        %1124 = vmatprep.mubr.f32.mxu0 0.0
        %1125 = vmatmul.mubr.f32.gmra.mrb[0].mxu0 %v580
        %v1126 = vpop.f32.mrb[0].mxu0
        %v1127 = vadd.f32 0.0, %v1126
        %v1128 = vpop.f32.mrb[0].mxu0
        %1129 = vmatprep.mubr.f32.mxu0 0.0
        %1130 = vmatmul.mubr.f32.gmra.mrb[0].mxu0 %v581
        %v1131 = vpop.f32.mrb[0].mxu0
        %v1132 = vadd.f32 0.0, %v1131
        %v1133 = vpop.f32.mrb[0].mxu0
        %1134 = vmatprep.mubr.f32.mxu0 0.0
        %1135 = vmatmul.mubr.f32.gmra.mrb[0].mxu0 %v582
        %v1136 = vpop.f32.mrb[0].mxu0
        %v1137 = vadd.f32 0.0, %v1136
        %v1138 = vpop.f32.mrb[0].mxu0
        %1139 = vmatprep.mubr.f32.mxu0 0.0
        %1140 = vmatmul.mubr.f32.gmra.mrb[0].mxu0 %v583
        %v1141 = vpop.f32.mrb[0].mxu0
        %v1142 = vadd.f32 0.0, %v1141
        %v1143 = vpop.f32.mrb[0].mxu0
        %1144 = vmatprep.mubr.f32.mxu0 0.0
        %1145 = vmatmul.mubr.f32.gmra.mrb[0].mxu0 %v584
        %v1146 = vpop.f32.mrb[0].mxu0
        %v1147 = vadd.f32 0.0, %v1146
        %v1148 = vpop.f32.mrb[0].mxu0
        %1149 = vmatprep.mubr.f32.mxu0 0.0
        %1150 = vmatmul.mubr.f32.gmra.mrb[0].mxu0 %v585
        %v1151 = vpop.f32.mrb[0].mxu0
        %v1152 = vadd.f32 0.0, %v1151
        %v1153 = vpop.f32.mrb[0].mxu0
        %1154 = vmatprep.mubr.f32.mxu0 0.0
        %1155 = vmatmul.mubr.f32.gmra.mrb[0].mxu0 %v586
        %v1156 = vpop.f32.mrb[0].mxu0
        %v1157 = vadd.f32 0.0, %v1156
        %v1158 = vpop.f32.mrb[0].mxu0
        %1159 = vmatprep.mubr.f32.mxu0 0.0
        %1160 = vmatmul.mubr.f32.gmra.mrb[0].mxu0 %v587
        %v1161 = vpop.f32.mrb[0].mxu0
        %v1162 = vadd.f32 0.0, %v1161
        %v1163 = vpop.f32.mrb[0].mxu0
        %1164 = vmatprep.mubr.f32.mxu0 0.0
        %1165 = vmatmul.mubr.f32.gmra.mrb[0].mxu0 %v588
        %v1166 = vpop.f32.mrb[0].mxu0
        %v1167 = vadd.f32 0.0, %v1166
        %v1168 = vpop.f32.mrb[0].mxu0
        %1169 = vmatprep.mubr.f32.mxu0 0.0
        %1170 = vmatmul.mubr.f32.gmra.mrb[0].mxu0 %v589
        %v1171 = vpop.f32.mrb[0].mxu0
        %v1172 = vadd.f32 0.0, %v1171
        %v1173 = vpop.f32.mrb[0].mxu0
        %1174 = vmatprep.mubr.f32.mxu0 0.0
        %1175 = vmatmul.mubr.f32.gmra.mrb[0].mxu0 %v590
        %v1176 = vpop.f32.mrb[0].mxu0
        %v1177 = vadd.f32 0.0, %v1176
        %v1178 = vpop.f32.mrb[0].mxu0
        %1179 = vmatprep.mubr.f32.mxu0 0.0
        %1180 = vmatmul.mubr.f32.gmra.mrb[0].mxu0 %v591
        %v1181 = vpop.f32.mrb[0].mxu0
        %v1182 = vadd.f32 0.0, %v1181
        %v1183 = vpop.f32.mrb[0].mxu0
        %1184 = vmatprep.mubr.f32.mxu0 0.0
        %1185 = vmatmul.mubr.f32.gmra.mrb[0].mxu0 %v592
        %v1186 = vpop.f32.mrb[0].mxu0
        %v1187 = vadd.f32 0.0, %v1186
        %v1188 = vpop.f32.mrb[0].mxu0
        %1189 = vmatprep.mubr.f32.mxu0 0.0
        %1190 = vmatmul.mubr.f32.gmra.mrb[0].mxu0 %v593
        %v1191 = vpop.f32.mrb[0].mxu0
        %v1192 = vadd.f32 0.0, %v1191
        %v1193 = vpop.f32.mrb[0].mxu0
        %1194 = vmatprep.mubr.f32.mxu0 0.0
        %1195 = vmatmul.mubr.f32.gmra.mrb[0].mxu0 %v594
        %v1196 = vpop.f32.mrb[0].mxu0
        %v1197 = vadd.f32 0.0, %v1196
        %v1198 = vpop.f32.mrb[0].mxu0
        %1199 = vmatprep.mubr.f32.mxu0 0.0
        %1200 = vmatmul.mubr.f32.gmra.mrb[0].mxu0 %v595
        %v1201 = vpop.f32.mrb[0].mxu0
        %v1202 = vadd.f32 0.0, %v1201
        %v1203 = vpop.f32.mrb[0].mxu0
        %1204 = vmatprep.mubr.f32.mxu0 0.0
        %1205 = vmatmul.mubr.f32.gmra.mrb[0].mxu0 %v596
        %v1206 = vpop.f32.mrb[0].mxu0
        %v1207 = vadd.f32 0.0, %v1206
        %v1208 = vpop.f32.mrb[0].mxu0
        %1209 = vmatprep.mubr.f32.mxu0 0.0
        %1210 = vmatmul.mubr.f32.gmra.mrb[0].mxu0 %v597
        %v1211 = vpop.f32.mrb[0].mxu0
        %v1212 = vadd.f32 0.0, %v1211
        %v1213 = vpop.f32.mrb[0].mxu0
        %1214 = vdwg.mxu0
        %v1215 = vadd.f32 %v942, %v1057
        %v1216 = vadd.f32 %v943, %v1062
        %v1217 = vadd.f32 %v944, %v1067
        %v1218 = vadd.f32 %v945, %v1072
        %v1219 = vadd.f32 %v946, %v1077
        %v1220 = vadd.f32 %v947, %v1082
        %v1221 = vadd.f32 %v948, %v1087
        %v1222 = vadd.f32 %v949, %v1092
        %v1223 = vadd.f32 %v950, %v1097
        %v1224 = vadd.f32 %v951, %v1102
        %v1225 = vadd.f32 %v952, %v1107
        %v1226 = vadd.f32 %v953, %v1112
        %v1227 = vadd.f32 %v954, %v1117
        %v1228 = vadd.f32 %v955, %v1122
        %v1229 = vadd.f32 %v956, %v1127
        %v1230 = vadd.f32 %v957, %v1132
        %v1231 = vadd.f32 %v958, %v1137
        %v1232 = vadd.f32 %v959, %v1142
        %v1233 = vadd.f32 %v960, %v1147
        %v1234 = vadd.f32 %v961, %v1152
        %v1235 = vadd.f32 %v962, %v1157
        %v1236 = vadd.f32 %v963, %v1162
        %v1237 = vadd.f32 %v964, %v1167
        %v1238 = vadd.f32 %v965, %v1172
        %v1239 = vadd.f32 %v966, %v1177
        %v1240 = vadd.f32 %v967, %v1182
        %v1241 = vadd.f32 %v968, %v1187
        %v1242 = vadd.f32 %v969, %v1192
        %v1243 = vadd.f32 %v970, %v1197
        %v1244 = vadd.f32 %v971, %v1202
        %v1245 = vadd.f32 %v972, %v1207
        %v1246 = vadd.f32 %v973, %v1212
        %v1247 = vld [vmem:[%s7] sm:$0x1]
        %v1249 = vlaneseq
        %v1250 = vshrl.u32 %v1249, 7
        %v1251 = vsub.s32 0, %v1250
        %v1252 = vrot.slane %v1247, %v1251
        %v1254 = vadd.f32 %v1215, %v1252
        %v1255 = vadd.f32 %v1216, %v1252
        %v1256 = vadd.f32 %v1217, %v1252
        %v1257 = vadd.f32 %v1218, %v1252
        %v1258 = vadd.f32 %v1219, %v1252
        %v1259 = vadd.f32 %v1220, %v1252
        %v1260 = vadd.f32 %v1221, %v1252
        %v1261 = vadd.f32 %v1222, %v1252
        %v1262 = vadd.f32 %v1223, %v1252
        %v1263 = vadd.f32 %v1224, %v1252
        %v1264 = vadd.f32 %v1225, %v1252
        %v1265 = vadd.f32 %v1226, %v1252
        %v1266 = vadd.f32 %v1227, %v1252
        %v1267 = vadd.f32 %v1228, %v1252
        %v1268 = vadd.f32 %v1229, %v1252
        %v1269 = vadd.f32 %v1230, %v1252
        %v1270 = vadd.f32 %v1231, %v1252
        %v1271 = vadd.f32 %v1232, %v1252
        %v1272 = vadd.f32 %v1233, %v1252
        %v1273 = vadd.f32 %v1234, %v1252
        %v1274 = vadd.f32 %v1235, %v1252
        %v1275 = vadd.f32 %v1236, %v1252
        %v1276 = vadd.f32 %v1237, %v1252
        %v1277 = vadd.f32 %v1238, %v1252
        %v1278 = vadd.f32 %v1239, %v1252
        %v1279 = vadd.f32 %v1240, %v1252
        %v1280 = vadd.f32 %v1241, %v1252
        %v1281 = vadd.f32 %v1242, %v1252
        %v1282 = vadd.f32 %v1243, %v1252
        %v1283 = vadd.f32 %v1244, %v1252
        %v1284 = vadd.f32 %v1245, %v1252
        %v1285 = vadd.f32 %v1246, %v1252
        %v1286 = vxor.u32 %v910, 2147483648
        %v1287 = vxor.u32 %v911, 2147483648
        %v1288 = vxor.u32 %v912, 2147483648
        %v1289 = vxor.u32 %v913, 2147483648
        %v1290 = vxor.u32 %v914, 2147483648
        %v1291 = vxor.u32 %v915, 2147483648
        %v1292 = vxor.u32 %v916, 2147483648
        %v1293 = vxor.u32 %v917, 2147483648
        %v1294 = vxor.u32 %v918, 2147483648
        %v1295 = vxor.u32 %v919, 2147483648
        %v1296 = vxor.u32 %v920, 2147483648
        %v1297 = vxor.u32 %v921, 2147483648
        %v1298 = vxor.u32 %v922, 2147483648
        %v1299 = vxor.u32 %v923, 2147483648
        %v1300 = vxor.u32 %v924, 2147483648
        %v1301 = vxor.u32 %v925, 2147483648
        %v1302 = vxor.u32 %v926, 2147483648
        %v1303 = vxor.u32 %v927, 2147483648
        %v1304 = vxor.u32 %v928, 2147483648
        %v1305 = vxor.u32 %v929, 2147483648
        %v1306 = vxor.u32 %v930, 2147483648
        %v1307 = vxor.u32 %v931, 2147483648
        %v1308 = vxor.u32 %v932, 2147483648
        %v1309 = vxor.u32 %v933, 2147483648
        %v1310 = vxor.u32 %v934, 2147483648
        %v1311 = vxor.u32 %v935, 2147483648
        %v1312 = vxor.u32 %v936, 2147483648
        %v1313 = vxor.u32 %v937, 2147483648
        %v1314 = vxor.u32 %v938, 2147483648
        %v1315 = vxor.u32 %v939, 2147483648
        %v1316 = vxor.u32 %v940, 2147483648
        %v1317 = vxor.u32 %v941, 2147483648
        %v1318 = vmul.f32 %v1286, 1.442695
        %v1319 = vpow.pop %v1318
        %v1320 = vmul.f32 %v1287, 1.442695
        %v1321 = vpow.pop %v1320
        %v1322 = vmul.f32 %v1288, 1.442695
        %v1323 = vpow.pop %v1322
        %v1324 = vmul.f32 %v1289, 1.442695
        %v1325 = vpow.pop %v1324
        %v1326 = vmul.f32 %v1290, 1.442695
        %v1327 = vpow.pop %v1326
        %v1328 = vmul.f32 %v1291, 1.442695
        %v1329 = vpow.pop %v1328
        %v1330 = vmul.f32 %v1292, 1.442695
        %v1331 = vpow.pop %v1330
        %v1332 = vmul.f32 %v1293, 1.442695
        %v1333 = vpow.pop %v1332
        %v1334 = vmul.f32 %v1294, 1.442695
        %v1335 = vpow.pop %v1334
        %v1336 = vmul.f32 %v1295, 1.442695
        %v1337 = vpow.pop %v1336
        %v1338 = vmul.f32 %v1296, 1.442695
        %v1339 = vpow.pop %v1338
        %v1340 = vmul.f32 %v1297, 1.442695
        %v1341 = vpow.pop %v1340
        %v1342 = vmul.f32 %v1298, 1.442695
        %v1343 = vpow.pop %v1342
        %v1344 = vmul.f32 %v1299, 1.442695
        %v1345 = vpow.pop %v1344
        %v1346 = vmul.f32 %v1300, 1.442695
        %v1347 = vpow.pop %v1346
        %v1348 = vmul.f32 %v1301, 1.442695
        %v1349 = vpow.pop %v1348
        %v1350 = vmul.f32 %v1302, 1.442695
        %v1351 = vpow.pop %v1350
        %v1352 = vmul.f32 %v1303, 1.442695
        %v1353 = vpow.pop %v1352
        %v1354 = vmul.f32 %v1304, 1.442695
        %v1355 = vpow.pop %v1354
        %v1356 = vmul.f32 %v1305, 1.442695
        %v1357 = vpow.pop %v1356
        %v1358 = vmul.f32 %v1306, 1.442695
        %v1359 = vpow.pop %v1358
        %v1360 = vmul.f32 %v1307, 1.442695
        %v1361 = vpow.pop %v1360
        %v1362 = vmul.f32 %v1308, 1.442695
        %v1363 = vpow.pop %v1362
        %v1364 = vmul.f32 %v1309, 1.442695
        %v1365 = vpow.pop %v1364
        %v1366 = vmul.f32 %v1310, 1.442695
        %v1367 = vpow.pop %v1366
        %v1368 = vmul.f32 %v1311, 1.442695
        %v1369 = vpow.pop %v1368
        %v1370 = vmul.f32 %v1312, 1.442695
        %v1371 = vpow.pop %v1370
        %v1372 = vmul.f32 %v1313, 1.442695
        %v1373 = vpow.pop %v1372
        %v1374 = vmul.f32 %v1314, 1.442695
        %v1375 = vpow.pop %v1374
        %v1376 = vmul.f32 %v1315, 1.442695
        %v1377 = vpow.pop %v1376
        %v1378 = vmul.f32 %v1316, 1.442695
        %v1379 = vpow.pop %v1378
        %v1380 = vmul.f32 %v1317, 1.442695
        %v1381 = vpow.pop %v1380
        %v1382 = vadd.f32 %v1319, 1.0
        %v1383 = vadd.f32 %v1321, 1.0
        %v1384 = vadd.f32 %v1323, 1.0
        %v1385 = vadd.f32 %v1325, 1.0
        %v1386 = vadd.f32 %v1327, 1.0
        %v1387 = vadd.f32 %v1329, 1.0
        %v1388 = vadd.f32 %v1331, 1.0
        %v1389 = vadd.f32 %v1333, 1.0
        %v1390 = vadd.f32 %v1335, 1.0
        %v1391 = vadd.f32 %v1337, 1.0
        %v1392 = vadd.f32 %v1339, 1.0
        %v1393 = vadd.f32 %v1341, 1.0
        %v1394 = vadd.f32 %v1343, 1.0
        %v1395 = vadd.f32 %v1345, 1.0
        %v1396 = vadd.f32 %v1347, 1.0
        %v1397 = vadd.f32 %v1349, 1.0
        %v1398 = vadd.f32 %v1351, 1.0
        %v1399 = vadd.f32 %v1353, 1.0
        %v1400 = vadd.f32 %v1355, 1.0
        %v1401 = vadd.f32 %v1357, 1.0
        %v1402 = vadd.f32 %v1359, 1.0
        %v1403 = vadd.f32 %v1361, 1.0
        %v1404 = vadd.f32 %v1363, 1.0
        %v1405 = vadd.f32 %v1365, 1.0
        %v1406 = vadd.f32 %v1367, 1.0
        %v1407 = vadd.f32 %v1369, 1.0
        %v1408 = vadd.f32 %v1371, 1.0
        %v1409 = vadd.f32 %v1373, 1.0
        %v1410 = vadd.f32 %v1375, 1.0
        %v1411 = vadd.f32 %v1377, 1.0
        %v1412 = vadd.f32 %v1379, 1.0
        %v1413 = vadd.f32 %v1381, 1.0
        %v1414 = vrcp.pop %v1382
        %v1415 = vmul.f32 1.0, %v1414
        %v1416 = vrcp.pop %v1383
        %v1417 = vmul.f32 1.0, %v1416
        %v1418 = vrcp.pop %v1384
        %v1419 = vmul.f32 1.0, %v1418
        %v1420 = vrcp.pop %v1385
        %v1421 = vmul.f32 1.0, %v1420
        %v1422 = vrcp.pop %v1386
        %v1423 = vmul.f32 1.0, %v1422
        %v1424 = vrcp.pop %v1387
        %v1425 = vmul.f32 1.0, %v1424
        %v1426 = vrcp.pop %v1388
        %v1427 = vmul.f32 1.0, %v1426
        %v1428 = vrcp.pop %v1389
        %v1429 = vmul.f32 1.0, %v1428
        %v1430 = vrcp.pop %v1390
        %v1431 = vmul.f32 1.0, %v1430
        %v1432 = vrcp.pop %v1391
        %v1433 = vmul.f32 1.0, %v1432
        %v1434 = vrcp.pop %v1392
        %v1435 = vmul.f32 1.0, %v1434
        %v1436 = vrcp.pop %v1393
        %v1437 = vmul.f32 1.0, %v1436
        %v1438 = vrcp.pop %v1394
        %v1439 = vmul.f32 1.0, %v1438
        %v1440 = vrcp.pop %v1395
        %v1441 = vmul.f32 1.0, %v1440
        %v1442 = vrcp.pop %v1396
        %v1443 = vmul.f32 1.0, %v1442
        %v1444 = vrcp.pop %v1397
        %v1445 = vmul.f32 1.0, %v1444
        %v1446 = vrcp.pop %v1398
        %v1447 = vmul.f32 1.0, %v1446
        %v1448 = vrcp.pop %v1399
        %v1449 = vmul.f32 1.0, %v1448
        %v1450 = vrcp.pop %v1400
        %v1451 = vmul.f32 1.0, %v1450
        %v1452 = vrcp.pop %v1401
        %v1453 = vmul.f32 1.0, %v1452
        %v1454 = vrcp.pop %v1402
        %v1455 = vmul.f32 1.0, %v1454
        %v1456 = vrcp.pop %v1403
        %v1457 = vmul.f32 1.0, %v1456
        %v1458 = vrcp.pop %v1404
        %v1459 = vmul.f32 1.0, %v1458
        %v1460 = vrcp.pop %v1405
        %v1461 = vmul.f32 1.0, %v1460
        %v1462 = vrcp.pop %v1406
        %v1463 = vmul.f32 1.0, %v1462
        %v1464 = vrcp.pop %v1407
        %v1465 = vmul.f32 1.0, %v1464
        %v1466 = vrcp.pop %v1408
        %v1467 = vmul.f32 1.0, %v1466
        %v1468 = vrcp.pop %v1409
        %v1469 = vmul.f32 1.0, %v1468
        %v1470 = vrcp.pop %v1410
        %v1471 = vmul.f32 1.0, %v1470
        %v1472 = vrcp.pop %v1411
        %v1473 = vmul.f32 1.0, %v1472
        %v1474 = vrcp.pop %v1412
        %v1475 = vmul.f32 1.0, %v1474
        %v1476 = vrcp.pop %v1413
        %v1477 = vmul.f32 1.0, %v1476
        %v1478 = vmax.f32 %v1254, 0.0
        %v1479 = vmax.f32 %v1255, 0.0
        %v1480 = vmax.f32 %v1256, 0.0
        %v1481 = vmax.f32 %v1257, 0.0
        %v1482 = vmax.f32 %v1258, 0.0
        %v1483 = vmax.f32 %v1259, 0.0
        %v1484 = vmax.f32 %v1260, 0.0
        %v1485 = vmax.f32 %v1261, 0.0
        %v1486 = vmax.f32 %v1262, 0.0
        %v1487 = vmax.f32 %v1263, 0.0
        %v1488 = vmax.f32 %v1264, 0.0
        %v1489 = vmax.f32 %v1265, 0.0
        %v1490 = vmax.f32 %v1266, 0.0
        %v1491 = vmax.f32 %v1267, 0.0
        %v1492 = vmax.f32 %v1268, 0.0
        %v1493 = vmax.f32 %v1269, 0.0
        %v1494 = vmax.f32 %v1270, 0.0
        %v1495 = vmax.f32 %v1271, 0.0
        %v1496 = vmax.f32 %v1272, 0.0
        %v1497 = vmax.f32 %v1273, 0.0
        %v1498 = vmax.f32 %v1274, 0.0
        %v1499 = vmax.f32 %v1275, 0.0
        %v1500 = vmax.f32 %v1276, 0.0
        %v1501 = vmax.f32 %v1277, 0.0
        %v1502 = vmax.f32 %v1278, 0.0
        %v1503 = vmax.f32 %v1279, 0.0
        %v1504 = vmax.f32 %v1280, 0.0
        %v1505 = vmax.f32 %v1281, 0.0
        %v1506 = vmax.f32 %v1282, 0.0
        %v1507 = vmax.f32 %v1283, 0.0
        %v1508 = vmax.f32 %v1284, 0.0
        %v1509 = vmax.f32 %v1285, 0.0
        %vm1510 = vcmp.ne.f32.partialorder %v1254, %v1254
        %vm1511 = vcmp.ne.f32.partialorder %v1255, %v1255
        %vm1512 = vcmp.ne.f32.partialorder %v1256, %v1256
        %vm1513 = vcmp.ne.f32.partialorder %v1257, %v1257
        %vm1514 = vcmp.ne.f32.partialorder %v1258, %v1258
        %vm1515 = vcmp.ne.f32.partialorder %v1259, %v1259
        %vm1516 = vcmp.ne.f32.partialorder %v1260, %v1260
        %vm1517 = vcmp.ne.f32.partialorder %v1261, %v1261
        %vm1518 = vcmp.ne.f32.partialorder %v1262, %v1262
        %vm1519 = vcmp.ne.f32.partialorder %v1263, %v1263
        %vm1520 = vcmp.ne.f32.partialorder %v1264, %v1264
        %vm1521 = vcmp.ne.f32.partialorder %v1265, %v1265
        %vm1522 = vcmp.ne.f32.partialorder %v1266, %v1266
        %vm1523 = vcmp.ne.f32.partialorder %v1267, %v1267
        %vm1524 = vcmp.ne.f32.partialorder %v1268, %v1268
        %vm1525 = vcmp.ne.f32.partialorder %v1269, %v1269
        %vm1526 = vcmp.ne.f32.partialorder %v1270, %v1270
        %vm1527 = vcmp.ne.f32.partialorder %v1271, %v1271
        %vm1528 = vcmp.ne.f32.partialorder %v1272, %v1272
        %vm1529 = vcmp.ne.f32.partialorder %v1273, %v1273
        %vm1530 = vcmp.ne.f32.partialorder %v1274, %v1274
        %vm1531 = vcmp.ne.f32.partialorder %v1275, %v1275
        %vm1532 = vcmp.ne.f32.partialorder %v1276, %v1276
        %vm1533 = vcmp.ne.f32.partialorder %v1277, %v1277
        %vm1534 = vcmp.ne.f32.partialorder %v1278, %v1278
        %vm1535 = vcmp.ne.f32.partialorder %v1279, %v1279
        %vm1536 = vcmp.ne.f32.partialorder %v1280, %v1280
        %vm1537 = vcmp.ne.f32.partialorder %v1281, %v1281
        %vm1538 = vcmp.ne.f32.partialorder %v1282, %v1282
        %vm1539 = vcmp.ne.f32.partialorder %v1283, %v1283
        %vm1540 = vcmp.ne.f32.partialorder %v1284, %v1284
        %vm1541 = vcmp.ne.f32.partialorder %v1285, %v1285
        %v1542 = vadd.f32 %v1254, 0.0
        %v1543 = vadd.f32 %v1255, 0.0
        %v1544 = vadd.f32 %v1256, 0.0
        %v1545 = vadd.f32 %v1257, 0.0
        %v1546 = vadd.f32 %v1258, 0.0
        %v1547 = vadd.f32 %v1259, 0.0
        %v1548 = vadd.f32 %v1260, 0.0
        %v1549 = vadd.f32 %v1261, 0.0
        %v1550 = vadd.f32 %v1262, 0.0
        %v1551 = vadd.f32 %v1263, 0.0
        %v1552 = vadd.f32 %v1264, 0.0
        %v1553 = vadd.f32 %v1265, 0.0
        %v1554 = vadd.f32 %v1266, 0.0
        %v1555 = vadd.f32 %v1267, 0.0
        %v1556 = vadd.f32 %v1268, 0.0
        %v1557 = vadd.f32 %v1269, 0.0
        %v1558 = vadd.f32 %v1270, 0.0
        %v1559 = vadd.f32 %v1271, 0.0
        %v1560 = vadd.f32 %v1272, 0.0
        %v1561 = vadd.f32 %v1273, 0.0
        %v1562 = vadd.f32 %v1274, 0.0
        %v1563 = vadd.f32 %v1275, 0.0
        %v1564 = vadd.f32 %v1276, 0.0
        %v1565 = vadd.f32 %v1277, 0.0
        %v1566 = vadd.f32 %v1278, 0.0
        %v1567 = vadd.f32 %v1279, 0.0
        %v1568 = vadd.f32 %v1280, 0.0
        %v1569 = vadd.f32 %v1281, 0.0
        %v1570 = vadd.f32 %v1282, 0.0
        %v1571 = vadd.f32 %v1283, 0.0
        %v1572 = vadd.f32 %v1284, 0.0
        %v1573 = vadd.f32 %v1285, 0.0
        %v1574 = vand.u32 2147483647, %v1254
        %v1575 = vand.u32 2147483647, %v1255
        %v1576 = vand.u32 2147483647, %v1256
        %v1577 = vand.u32 2147483647, %v1257
        %v1578 = vand.u32 2147483647, %v1258
        %v1579 = vand.u32 2147483647, %v1259
        %v1580 = vand.u32 2147483647, %v1260
        %v1581 = vand.u32 2147483647, %v1261
        %v1582 = vand.u32 2147483647, %v1262
        %v1583 = vand.u32 2147483647, %v1263
        %v1584 = vand.u32 2147483647, %v1264
        %v1585 = vand.u32 2147483647, %v1265
        %v1586 = vand.u32 2147483647, %v1266
        %v1587 = vand.u32 2147483647, %v1267
        %v1588 = vand.u32 2147483647, %v1268
        %v1589 = vand.u32 2147483647, %v1269
        %v1590 = vand.u32 2147483647, %v1270
        %v1591 = vand.u32 2147483647, %v1271
        %v1592 = vand.u32 2147483647, %v1272
        %v1593 = vand.u32 2147483647, %v1273
        %v1594 = vand.u32 2147483647, %v1274
        %v1595 = vand.u32 2147483647, %v1275
        %v1596 = vand.u32 2147483647, %v1276
        %v1597 = vand.u32 2147483647, %v1277
        %v1598 = vand.u32 2147483647, %v1278
        %v1599 = vand.u32 2147483647, %v1279
        %v1600 = vand.u32 2147483647, %v1280
        %v1601 = vand.u32 2147483647, %v1281
        %v1602 = vand.u32 2147483647, %v1282
        %v1603 = vand.u32 2147483647, %v1283
        %v1604 = vand.u32 2147483647, %v1284
        %v1605 = vand.u32 2147483647, %v1285
        %v1606 = vsub.f32 0.0, %v1574
        %v1607 = vsub.f32 0.0, %v1575
        %v1608 = vsub.f32 0.0, %v1576
        %v1609 = vsub.f32 0.0, %v1577
        %v1610 = vsub.f32 0.0, %v1578
        %v1611 = vsub.f32 0.0, %v1579
        %v1612 = vsub.f32 0.0, %v1580
        %v1613 = vsub.f32 0.0, %v1581
        %v1614 = vsub.f32 0.0, %v1582
        %v1615 = vsub.f32 0.0, %v1583
        %v1616 = vsub.f32 0.0, %v1584
        %v1617 = vsub.f32 0.0, %v1585
        %v1618 = vsub.f32 0.0, %v1586
        %v1619 = vsub.f32 0.0, %v1587
        %v1620 = vsub.f32 0.0, %v1588
        %v1621 = vsub.f32 0.0, %v1589
        %v1622 = vsub.f32 0.0, %v1590
        %v1623 = vsub.f32 0.0, %v1591
        %v1624 = vsub.f32 0.0, %v1592
        %v1625 = vsub.f32 0.0, %v1593
        %v1626 = vsub.f32 0.0, %v1594
        %v1627 = vsub.f32 0.0, %v1595
        %v1628 = vsub.f32 0.0, %v1596
        %v1629 = vsub.f32 0.0, %v1597
        %v1630 = vsub.f32 0.0, %v1598
        %v1631 = vsub.f32 0.0, %v1599
        %v1632 = vsub.f32 0.0, %v1600
        %v1633 = vsub.f32 0.0, %v1601
        %v1634 = vsub.f32 0.0, %v1602
        %v1635 = vsub.f32 0.0, %v1603
        %v1636 = vsub.f32 0.0, %v1604
        %v1637 = vsub.f32 0.0, %v1605
        %v1638 = vmul.f32 %v1606, 1.442695
        %v1639 = vpow.pop %v1638
        %v1640 = vmul.f32 %v1607, 1.442695
        %v1641 = vpow.pop %v1640
        %v1642 = vmul.f32 %v1608, 1.442695
        %v1643 = vpow.pop %v1642
        %v1644 = vmul.f32 %v1609, 1.442695
        %v1645 = vpow.pop %v1644
        %v1646 = vmul.f32 %v1610, 1.442695
        %v1647 = vpow.pop %v1646
        %v1648 = vmul.f32 %v1611, 1.442695
        %v1649 = vpow.pop %v1648
        %v1650 = vmul.f32 %v1612, 1.442695
        %v1651 = vpow.pop %v1650
        %v1652 = vmul.f32 %v1613, 1.442695
        %v1653 = vpow.pop %v1652
        %v1654 = vmul.f32 %v1614, 1.442695
        %v1655 = vpow.pop %v1654
        %v1656 = vmul.f32 %v1615, 1.442695
        %v1657 = vpow.pop %v1656
        %v1658 = vmul.f32 %v1616, 1.442695
        %v1659 = vpow.pop %v1658
        %v1660 = vmul.f32 %v1617, 1.442695
        %v1661 = vpow.pop %v1660
        %v1662 = vmul.f32 %v1618, 1.442695
        %v1663 = vpow.pop %v1662
        %v1664 = vmul.f32 %v1619, 1.442695
        %v1665 = vpow.pop %v1664
        %v1666 = vmul.f32 %v1620, 1.442695
        %v1667 = vpow.pop %v1666
        %v1668 = vmul.f32 %v1621, 1.442695
        %v1669 = vpow.pop %v1668
        %v1670 = vmul.f32 %v1622, 1.442695
        %v1671 = vpow.pop %v1670
        %v1672 = vmul.f32 %v1623, 1.442695
        %v1673 = vpow.pop %v1672
        %v1674 = vmul.f32 %v1624, 1.442695
        %v1675 = vpow.pop %v1674
        %v1676 = vmul.f32 %v1625, 1.442695
        %v1677 = vpow.pop %v1676
        %v1678 = vmul.f32 %v1626, 1.442695
        %v1679 = vpow.pop %v1678
        %v1680 = vmul.f32 %v1627, 1.442695
        %v1681 = vpow.pop %v1680
        %v1682 = vmul.f32 %v1628, 1.442695
        %v1683 = vpow.pop %v1682
        %v1684 = vmul.f32 %v1629, 1.442695
        %v1685 = vpow.pop %v1684
        %v1686 = vmul.f32 %v1630, 1.442695
        %v1687 = vpow.pop %v1686
        %v1688 = vmul.f32 %v1631, 1.442695
        %v1689 = vpow.pop %v1688
        %v1690 = vmul.f32 %v1632, 1.442695
        %v1691 = vpow.pop %v1690
        %v1692 = vmul.f32 %v1633, 1.442695
        %v1693 = vpow.pop %v1692
        %v1694 = vmul.f32 %v1634, 1.442695
        %v1695 = vpow.pop %v1694
        %v1696 = vmul.f32 %v1635, 1.442695
        %v1697 = vpow.pop %v1696
        %v1698 = vmul.f32 %v1636, 1.442695
        %v1699 = vpow.pop %v1698
        %v1700 = vmul.f32 %v1637, 1.442695
        %v1701 = vpow.pop %v1700
        %v1702 = vadd.f32 %v1639, 1.0
        %v1703 = vlog2.pop %v1702
        %v1704 = vmul.f32 %v1703, 0.6931472
        %v1705 = vmul.f32 -0.5, %v1639
        %v1706 = vadd.f32 %v1705, 1.0
        %v1707 = vmul.f32 %v1706, %v1639
        %v1708 = vand.u32 2147483647, %v1639
        %vm1709 = vcmp.lt.f32.partialorder %v1708, 0.0004427343
        %v1710 = vsel %vm1709, %v1707, %v1704
        %v1711 = vadd.f32 %v1641, 1.0
        %v1712 = vlog2.pop %v1711
        %v1713 = vmul.f32 %v1712, 0.6931472
        %v1714 = vmul.f32 -0.5, %v1641
        %v1715 = vadd.f32 %v1714, 1.0
        %v1716 = vmul.f32 %v1715, %v1641
        %v1717 = vand.u32 2147483647, %v1641
        %vm1718 = vcmp.lt.f32.partialorder %v1717, 0.0004427343
        %v1719 = vsel %vm1718, %v1716, %v1713
        %v1720 = vadd.f32 %v1643, 1.0
        %v1721 = vlog2.pop %v1720
        %v1722 = vmul.f32 %v1721, 0.6931472
        %v1723 = vmul.f32 -0.5, %v1643
        %v1724 = vadd.f32 %v1723, 1.0
        %v1725 = vmul.f32 %v1724, %v1643
        %v1726 = vand.u32 2147483647, %v1643
        %vm1727 = vcmp.lt.f32.partialorder %v1726, 0.0004427343
        %v1728 = vsel %vm1727, %v1725, %v1722
        %v1729 = vadd.f32 %v1645, 1.0
        %v1730 = vlog2.pop %v1729
        %v1731 = vmul.f32 %v1730, 0.6931472
        %v1732 = vmul.f32 -0.5, %v1645
        %v1733 = vadd.f32 %v1732, 1.0
        %v1734 = vmul.f32 %v1733, %v1645
        %v1735 = vand.u32 2147483647, %v1645
        %vm1736 = vcmp.lt.f32.partialorder %v1735, 0.0004427343
        %v1737 = vsel %vm1736, %v1734, %v1731
        %v1738 = vadd.f32 %v1647, 1.0
        %v1739 = vlog2.pop %v1738
        %v1740 = vmul.f32 %v1739, 0.6931472
        %v1741 = vmul.f32 -0.5, %v1647
        %v1742 = vadd.f32 %v1741, 1.0
        %v1743 = vmul.f32 %v1742, %v1647
        %v1744 = vand.u32 2147483647, %v1647
        %vm1745 = vcmp.lt.f32.partialorder %v1744, 0.0004427343
        %v1746 = vsel %vm1745, %v1743, %v1740
        %v1747 = vadd.f32 %v1649, 1.0
        %v1748 = vlog2.pop %v1747
        %v1749 = vmul.f32 %v1748, 0.6931472
        %v1750 = vmul.f32 -0.5, %v1649
        %v1751 = vadd.f32 %v1750, 1.0
        %v1752 = vmul.f32 %v1751, %v1649
        %v1753 = vand.u32 2147483647, %v1649
        %vm1754 = vcmp.lt.f32.partialorder %v1753, 0.0004427343
        %v1755 = vsel %vm1754, %v1752, %v1749
        %v1756 = vadd.f32 %v1651, 1.0
        %v1757 = vlog2.pop %v1756
        %v1758 = vmul.f32 %v1757, 0.6931472
        %v1759 = vmul.f32 -0.5, %v1651
        %v1760 = vadd.f32 %v1759, 1.0
        %v1761 = vmul.f32 %v1760, %v1651
        %v1762 = vand.u32 2147483647, %v1651
        %vm1763 = vcmp.lt.f32.partialorder %v1762, 0.0004427343
        %v1764 = vsel %vm1763, %v1761, %v1758
        %v1765 = vadd.f32 %v1653, 1.0
        %v1766 = vlog2.pop %v1765
        %v1767 = vmul.f32 %v1766, 0.6931472
        %v1768 = vmul.f32 -0.5, %v1653
        %v1769 = vadd.f32 %v1768, 1.0
        %v1770 = vmul.f32 %v1769, %v1653
        %v1771 = vand.u32 2147483647, %v1653
        %vm1772 = vcmp.lt.f32.partialorder %v1771, 0.0004427343
        %v1773 = vsel %vm1772, %v1770, %v1767
        %v1774 = vadd.f32 %v1655, 1.0
        %v1775 = vlog2.pop %v1774
        %v1776 = vmul.f32 %v1775, 0.6931472
        %v1777 = vmul.f32 -0.5, %v1655
        %v1778 = vadd.f32 %v1777, 1.0
        %v1779 = vmul.f32 %v1778, %v1655
        %v1780 = vand.u32 2147483647, %v1655
        %vm1781 = vcmp.lt.f32.partialorder %v1780, 0.0004427343
        %v1782 = vsel %vm1781, %v1779, %v1776
        %v1783 = vadd.f32 %v1657, 1.0
        %v1784 = vlog2.pop %v1783
        %v1785 = vmul.f32 %v1784, 0.6931472
        %v1786 = vmul.f32 -0.5, %v1657
        %v1787 = vadd.f32 %v1786, 1.0
        %v1788 = vmul.f32 %v1787, %v1657
        %v1789 = vand.u32 2147483647, %v1657
        %vm1790 = vcmp.lt.f32.partialorder %v1789, 0.0004427343
        %v1791 = vsel %vm1790, %v1788, %v1785
        %v1792 = vadd.f32 %v1659, 1.0
        %v1793 = vlog2.pop %v1792
        %v1794 = vmul.f32 %v1793, 0.6931472
        %v1795 = vmul.f32 -0.5, %v1659
        %v1796 = vadd.f32 %v1795, 1.0
        %v1797 = vmul.f32 %v1796, %v1659
        %v1798 = vand.u32 2147483647, %v1659
        %vm1799 = vcmp.lt.f32.partialorder %v1798, 0.0004427343
        %v1800 = vsel %vm1799, %v1797, %v1794
        %v1801 = vadd.f32 %v1661, 1.0
        %v1802 = vlog2.pop %v1801
        %v1803 = vmul.f32 %v1802, 0.6931472
        %v1804 = vmul.f32 -0.5, %v1661
        %v1805 = vadd.f32 %v1804, 1.0
        %v1806 = vmul.f32 %v1805, %v1661
        %v1807 = vand.u32 2147483647, %v1661
        %vm1808 = vcmp.lt.f32.partialorder %v1807, 0.0004427343
        %v1809 = vsel %vm1808, %v1806, %v1803
        %v1810 = vadd.f32 %v1663, 1.0
        %v1811 = vlog2.pop %v1810
        %v1812 = vmul.f32 %v1811, 0.6931472
        %v1813 = vmul.f32 -0.5, %v1663
        %v1814 = vadd.f32 %v1813, 1.0
        %v1815 = vmul.f32 %v1814, %v1663
        %v1816 = vand.u32 2147483647, %v1663
        %vm1817 = vcmp.lt.f32.partialorder %v1816, 0.0004427343
        %v1818 = vsel %vm1817, %v1815, %v1812
        %v1819 = vadd.f32 %v1665, 1.0
        %v1820 = vlog2.pop %v1819
        %v1821 = vmul.f32 %v1820, 0.6931472
        %v1822 = vmul.f32 -0.5, %v1665
        %v1823 = vadd.f32 %v1822, 1.0
        %v1824 = vmul.f32 %v1823, %v1665
        %v1825 = vand.u32 2147483647, %v1665
        %vm1826 = vcmp.lt.f32.partialorder %v1825, 0.0004427343
        %v1827 = vsel %vm1826, %v1824, %v1821
        %v1828 = vadd.f32 %v1667, 1.0
        %v1829 = vlog2.pop %v1828
        %v1830 = vmul.f32 %v1829, 0.6931472
        %v1831 = vmul.f32 -0.5, %v1667
        %v1832 = vadd.f32 %v1831, 1.0
        %v1833 = vmul.f32 %v1832, %v1667
        %v1834 = vand.u32 2147483647, %v1667
        %vm1835 = vcmp.lt.f32.partialorder %v1834, 0.0004427343
        %v1836 = vsel %vm1835, %v1833, %v1830
        %v1837 = vadd.f32 %v1669, 1.0
        %v1838 = vlog2.pop %v1837
        %v1839 = vmul.f32 %v1838, 0.6931472
        %v1840 = vmul.f32 -0.5, %v1669
        %v1841 = vadd.f32 %v1840, 1.0
        %v1842 = vmul.f32 %v1841, %v1669
        %v1843 = vand.u32 2147483647, %v1669
        %vm1844 = vcmp.lt.f32.partialorder %v1843, 0.0004427343
        %v1845 = vsel %vm1844, %v1842, %v1839
        %v1846 = vadd.f32 %v1671, 1.0
        %v1847 = vlog2.pop %v1846
        %v1848 = vmul.f32 %v1847, 0.6931472
        %v1849 = vmul.f32 -0.5, %v1671
        %v1850 = vadd.f32 %v1849, 1.0
        %v1851 = vmul.f32 %v1850, %v1671
        %v1852 = vand.u32 2147483647, %v1671
        %vm1853 = vcmp.lt.f32.partialorder %v1852, 0.0004427343
        %v1854 = vsel %vm1853, %v1851, %v1848
        %v1855 = vadd.f32 %v1673, 1.0
        %v1856 = vlog2.pop %v1855
        %v1857 = vmul.f32 %v1856, 0.6931472
        %v1858 = vmul.f32 -0.5, %v1673
        %v1859 = vadd.f32 %v1858, 1.0
        %v1860 = vmul.f32 %v1859, %v1673
        %v1861 = vand.u32 2147483647, %v1673
        %vm1862 = vcmp.lt.f32.partialorder %v1861, 0.0004427343
        %v1863 = vsel %vm1862, %v1860, %v1857
        %v1864 = vadd.f32 %v1675, 1.0
        %v1865 = vlog2.pop %v1864
        %v1866 = vmul.f32 %v1865, 0.6931472
        %v1867 = vmul.f32 -0.5, %v1675
        %v1868 = vadd.f32 %v1867, 1.0
        %v1869 = vmul.f32 %v1868, %v1675
        %v1870 = vand.u32 2147483647, %v1675
        %vm1871 = vcmp.lt.f32.partialorder %v1870, 0.0004427343
        %v1872 = vsel %vm1871, %v1869, %v1866
        %v1873 = vadd.f32 %v1677, 1.0
        %v1874 = vlog2.pop %v1873
        %v1875 = vmul.f32 %v1874, 0.6931472
        %v1876 = vmul.f32 -0.5, %v1677
        %v1877 = vadd.f32 %v1876, 1.0
        %v1878 = vmul.f32 %v1877, %v1677
        %v1879 = vand.u32 2147483647, %v1677
        %vm1880 = vcmp.lt.f32.partialorder %v1879, 0.0004427343
        %v1881 = vsel %vm1880, %v1878, %v1875
        %v1882 = vadd.f32 %v1679, 1.0
        %v1883 = vlog2.pop %v1882
        %v1884 = vmul.f32 %v1883, 0.6931472
        %v1885 = vmul.f32 -0.5, %v1679
        %v1886 = vadd.f32 %v1885, 1.0
        %v1887 = vmul.f32 %v1886, %v1679
        %v1888 = vand.u32 2147483647, %v1679
        %vm1889 = vcmp.lt.f32.partialorder %v1888, 0.0004427343
        %v1890 = vsel %vm1889, %v1887, %v1884
        %v1891 = vadd.f32 %v1681, 1.0
        %v1892 = vlog2.pop %v1891
        %v1893 = vmul.f32 %v1892, 0.6931472
        %v1894 = vmul.f32 -0.5, %v1681
        %v1895 = vadd.f32 %v1894, 1.0
        %v1896 = vmul.f32 %v1895, %v1681
        %v1897 = vand.u32 2147483647, %v1681
        %vm1898 = vcmp.lt.f32.partialorder %v1897, 0.0004427343
        %v1899 = vsel %vm1898, %v1896, %v1893
        %v1900 = vadd.f32 %v1683, 1.0
        %v1901 = vlog2.pop %v1900
        %v1902 = vmul.f32 %v1901, 0.6931472
        %v1903 = vmul.f32 -0.5, %v1683
        %v1904 = vadd.f32 %v1903, 1.0
        %v1905 = vmul.f32 %v1904, %v1683
        %v1906 = vand.u32 2147483647, %v1683
        %vm1907 = vcmp.lt.f32.partialorder %v1906, 0.0004427343
        %v1908 = vsel %vm1907, %v1905, %v1902
        %v1909 = vadd.f32 %v1685, 1.0
        %v1910 = vlog2.pop %v1909
        %v1911 = vmul.f32 %v1910, 0.6931472
        %v1912 = vmul.f32 -0.5, %v1685
        %v1913 = vadd.f32 %v1912, 1.0
        %v1914 = vmul.f32 %v1913, %v1685
        %v1915 = vand.u32 2147483647, %v1685
        %vm1916 = vcmp.lt.f32.partialorder %v1915, 0.0004427343
        %v1917 = vsel %vm1916, %v1914, %v1911
        %v1918 = vadd.f32 %v1687, 1.0
        %v1919 = vlog2.pop %v1918
        %v1920 = vmul.f32 %v1919, 0.6931472
        %v1921 = vmul.f32 -0.5, %v1687
        %v1922 = vadd.f32 %v1921, 1.0
        %v1923 = vmul.f32 %v1922, %v1687
        %v1924 = vand.u32 2147483647, %v1687
        %vm1925 = vcmp.lt.f32.partialorder %v1924, 0.0004427343
        %v1926 = vsel %vm1925, %v1923, %v1920
        %v1927 = vadd.f32 %v1689, 1.0
        %v1928 = vlog2.pop %v1927
        %v1929 = vmul.f32 %v1928, 0.6931472
        %v1930 = vmul.f32 -0.5, %v1689
        %v1931 = vadd.f32 %v1930, 1.0
        %v1932 = vmul.f32 %v1931, %v1689
        %v1933 = vand.u32 2147483647, %v1689
        %vm1934 = vcmp.lt.f32.partialorder %v1933, 0.0004427343
        %v1935 = vsel %vm1934, %v1932, %v1929
        %v1936 = vadd.f32 %v1691, 1.0
        %v1937 = vlog2.pop %v1936
        %v1938 = vmul.f32 %v1937, 0.6931472
        %v1939 = vmul.f32 -0.5, %v1691
        %v1940 = vadd.f32 %v1939, 1.0
        %v1941 = vmul.f32 %v1940, %v1691
        %v1942 = vand.u32 2147483647, %v1691
        %vm1943 = vcmp.lt.f32.partialorder %v1942, 0.0004427343
        %v1944 = vsel %vm1943, %v1941, %v1938
        %v1945 = vadd.f32 %v1693, 1.0
        %v1946 = vlog2.pop %v1945
        %v1947 = vmul.f32 %v1946, 0.6931472
        %v1948 = vmul.f32 -0.5, %v1693
        %v1949 = vadd.f32 %v1948, 1.0
        %v1950 = vmul.f32 %v1949, %v1693
        %v1951 = vand.u32 2147483647, %v1693
        %vm1952 = vcmp.lt.f32.partialorder %v1951, 0.0004427343
        %v1953 = vsel %vm1952, %v1950, %v1947
        %v1954 = vadd.f32 %v1695, 1.0
        %v1955 = vlog2.pop %v1954
        %v1956 = vmul.f32 %v1955, 0.6931472
        %v1957 = vmul.f32 -0.5, %v1695
        %v1958 = vadd.f32 %v1957, 1.0
        %v1959 = vmul.f32 %v1958, %v1695
        %v1960 = vand.u32 2147483647, %v1695
        %vm1961 = vcmp.lt.f32.partialorder %v1960, 0.0004427343
        %v1962 = vsel %vm1961, %v1959, %v1956
        %v1963 = vadd.f32 %v1697, 1.0
        %v1964 = vlog2.pop %v1963
        %v1965 = vmul.f32 %v1964, 0.6931472
        %v1966 = vmul.f32 -0.5, %v1697
        %v1967 = vadd.f32 %v1966, 1.0
        %v1968 = vmul.f32 %v1967, %v1697
        %v1969 = vand.u32 2147483647, %v1697
        %vm1970 = vcmp.lt.f32.partialorder %v1969, 0.0004427343
        %v1971 = vsel %vm1970, %v1968, %v1965
        %v1972 = vadd.f32 %v1699, 1.0
        %v1973 = vlog2.pop %v1972
        %v1974 = vmul.f32 %v1973, 0.6931472
        %v1975 = vmul.f32 -0.5, %v1699
        %v1976 = vadd.f32 %v1975, 1.0
        %v1977 = vmul.f32 %v1976, %v1699
        %v1978 = vand.u32 2147483647, %v1699
        %vm1979 = vcmp.lt.f32.partialorder %v1978, 0.0004427343
        %v1980 = vsel %vm1979, %v1977, %v1974
        %v1981 = vadd.f32 %v1701, 1.0
        %v1982 = vlog2.pop %v1981
        %v1983 = vmul.f32 %v1982, 0.6931472
        %v1984 = vmul.f32 -0.5, %v1701
        %v1985 = vadd.f32 %v1984, 1.0
        %v1986 = vmul.f32 %v1985, %v1701
        %v1987 = vand.u32 2147483647, %v1701
        %vm1988 = vcmp.lt.f32.partialorder %v1987, 0.0004427343
        %v1989 = vsel %vm1988, %v1986, %v1983
        %v1990 = vadd.f32 %v1478, %v1710
        %v1991 = vadd.f32 %v1479, %v1719
        %v1992 = vadd.f32 %v1480, %v1728
        %v1993 = vadd.f32 %v1481, %v1737
        %v1994 = vadd.f32 %v1482, %v1746
        %v1995 = vadd.f32 %v1483, %v1755
        %v1996 = vadd.f32 %v1484, %v1764
        %v1997 = vadd.f32 %v1485, %v1773
        %v1998 = vadd.f32 %v1486, %v1782
        %v1999 = vadd.f32 %v1487, %v1791
        %v2000 = vadd.f32 %v1488, %v1800
        %v2001 = vadd.f32 %v1489, %v1809
        %v2002 = vadd.f32 %v1490, %v1818
        %v2003 = vadd.f32 %v1491, %v1827
        %v2004 = vadd.f32 %v1492, %v1836
        %v2005 = vadd.f32 %v1493, %v1845
        %v2006 = vadd.f32 %v1494, %v1854
        %v2007 = vadd.f32 %v1495, %v1863
        %v2008 = vadd.f32 %v1496, %v1872
        %v2009 = vadd.f32 %v1497, %v1881
        %v2010 = vadd.f32 %v1498, %v1890
        %v2011 = vadd.f32 %v1499, %v1899
        %v2012 = vadd.f32 %v1500, %v1908
        %v2013 = vadd.f32 %v1501, %v1917
        %v2014 = vadd.f32 %v1502, %v1926
        %v2015 = vadd.f32 %v1503, %v1935
        %v2016 = vadd.f32 %v1504, %v1944
        %v2017 = vadd.f32 %v1505, %v1953
        %v2018 = vadd.f32 %v1506, %v1962
        %v2019 = vadd.f32 %v1507, %v1971
        %v2020 = vadd.f32 %v1508, %v1980
        %v2021 = vadd.f32 %v1509, %v1989
        %v2022 = vsel %vm1510, %v1542, %v1990
        %v2023 = vsel %vm1511, %v1543, %v1991
        %v2024 = vsel %vm1512, %v1544, %v1992
        %v2025 = vsel %vm1513, %v1545, %v1993
        %v2026 = vsel %vm1514, %v1546, %v1994
        %v2027 = vsel %vm1515, %v1547, %v1995
        %v2028 = vsel %vm1516, %v1548, %v1996
        %v2029 = vsel %vm1517, %v1549, %v1997
        %v2030 = vsel %vm1518, %v1550, %v1998
        %v2031 = vsel %vm1519, %v1551, %v1999
        %v2032 = vsel %vm1520, %v1552, %v2000
        %v2033 = vsel %vm1521, %v1553, %v2001
        %v2034 = vsel %vm1522, %v1554, %v2002
        %v2035 = vsel %vm1523, %v1555, %v2003
        %v2036 = vsel %vm1524, %v1556, %v2004
        %v2037 = vsel %vm1525, %v1557, %v2005
        %v2038 = vsel %vm1526, %v1558, %v2006
        %v2039 = vsel %vm1527, %v1559, %v2007
        %v2040 = vsel %vm1528, %v1560, %v2008
        %v2041 = vsel %vm1529, %v1561, %v2009
        %v2042 = vsel %vm1530, %v1562, %v2010
        %v2043 = vsel %vm1531, %v1563, %v2011
        %v2044 = vsel %vm1532, %v1564, %v2012
        %v2045 = vsel %vm1533, %v1565, %v2013
        %v2046 = vsel %vm1534, %v1566, %v2014
        %v2047 = vsel %vm1535, %v1567, %v2015
        %v2048 = vsel %vm1536, %v1568, %v2016
        %v2049 = vsel %vm1537, %v1569, %v2017
        %v2050 = vsel %vm1538, %v1570, %v2018
        %v2051 = vsel %vm1539, %v1571, %v2019
        %v2052 = vsel %vm1540, %v1572, %v2020
        %v2053 = vsel %vm1541, %v1573, %v2021
        %v2054 = vmul.f32 %v1415, %v2022
        %v2055 = vmul.f32 %v1417, %v2023
        %v2056 = vmul.f32 %v1419, %v2024
        %v2057 = vmul.f32 %v1421, %v2025
        %v2058 = vmul.f32 %v1423, %v2026
        %v2059 = vmul.f32 %v1425, %v2027
        %v2060 = vmul.f32 %v1427, %v2028
        %v2061 = vmul.f32 %v1429, %v2029
        %v2062 = vmul.f32 %v1431, %v2030
        %v2063 = vmul.f32 %v1433, %v2031
        %v2064 = vmul.f32 %v1435, %v2032
        %v2065 = vmul.f32 %v1437, %v2033
        %v2066 = vmul.f32 %v1439, %v2034
        %v2067 = vmul.f32 %v1441, %v2035
        %v2068 = vmul.f32 %v1443, %v2036
        %v2069 = vmul.f32 %v1445, %v2037
        %v2070 = vmul.f32 %v1447, %v2038
        %v2071 = vmul.f32 %v1449, %v2039
        %v2072 = vmul.f32 %v1451, %v2040
        %v2073 = vmul.f32 %v1453, %v2041
        %v2074 = vmul.f32 %v1455, %v2042
        %v2075 = vmul.f32 %v1457, %v2043
        %v2076 = vmul.f32 %v1459, %v2044
        %v2077 = vmul.f32 %v1461, %v2045
        %v2078 = vmul.f32 %v1463, %v2046
        %v2079 = vmul.f32 %v1465, %v2047
        %v2080 = vmul.f32 %v1467, %v2048
        %v2081 = vmul.f32 %v1469, %v2049
        %v2082 = vmul.f32 %v1471, %v2050
        %v2083 = vmul.f32 %v1473, %v2051
        %v2084 = vmul.f32 %v1475, %v2052
        %v2085 = vmul.f32 %v1477, %v2053
        %v2086 = vlaneseq
        %v2087 = vshrl.u32 %v2086, 7
        %v2088 = vadd.s32 %v2087, 8
        %v2089 = vadd.s32 %v2087, 16
        %v2090 = vadd.s32 %v2087, 24
        %v2091 = vadd.s32 %v2087, 32
        %v2092 = vadd.s32 %v2087, 40
        %v2093 = vadd.s32 %v2087, 48
        %v2094 = vadd.s32 %v2087, 56
        %s2095 = smul.u32 %s36, 64
        %v2096 = vstv %s2095
        %v2097 = vadd.s32 %v2087, %v2096
        %v2098 = vadd.s32 %v2088, %v2096
        %v2099 = vadd.s32 %v2089, %v2096
        %v2100 = vadd.s32 %v2090, %v2096
        %v2101 = vadd.s32 %v2091, %v2096
        %v2102 = vadd.s32 %v2092, %v2096
        %v2103 = vadd.s32 %v2093, %v2096
        %v2104 = vadd.s32 %v2094, %v2096
        %v2105 = vld [vmem:[%s542] sm:$0x3]
        %v2106 = vlaneseq
        %v2107 = vshrl.u32 %v2106, 7
        %v2108 = vsub.s32 0, %v2107
        %v2109 = vrot.slane %v2105, %v2108
        %v2110 = vlaneseq
        %v2111 = vshrl.u32 %v2110, 7
        %v2112 = vsub.s32 1, %v2111
        %v2113 = vrot.slane %v2105, %v2112
        %vm2114 = vcmp.eq.s32.totalorder %v2097, %v2109
        %vm2115 = vcmp.eq.s32.totalorder %v2097, %v2113
        %vm2116 = vcmp.eq.s32.totalorder %v2098, %v2109
        %vm2117 = vcmp.eq.s32.totalorder %v2098, %v2113
        %vm2118 = vcmp.eq.s32.totalorder %v2099, %v2109
        %vm2119 = vcmp.eq.s32.totalorder %v2099, %v2113
        %vm2120 = vcmp.eq.s32.totalorder %v2100, %v2109
        %vm2121 = vcmp.eq.s32.totalorder %v2100, %v2113
        %vm2122 = vcmp.eq.s32.totalorder %v2101, %v2109
        %vm2123 = vcmp.eq.s32.totalorder %v2101, %v2113
        %vm2124 = vcmp.eq.s32.totalorder %v2102, %v2109
        %vm2125 = vcmp.eq.s32.totalorder %v2102, %v2113
        %vm2126 = vcmp.eq.s32.totalorder %v2103, %v2109
        %vm2127 = vcmp.eq.s32.totalorder %v2103, %v2113
        %vm2128 = vcmp.eq.s32.totalorder %v2104, %v2109
        %vm2129 = vcmp.eq.s32.totalorder %v2104, %v2113
        %v2130 = vsel %vm2114, 1, 0
        %v2131 = vsel %vm2115, 1, 0
        %v2132 = vsel %vm2116, 1, 0
        %v2133 = vsel %vm2117, 1, 0
        %v2134 = vsel %vm2118, 1, 0
        %v2135 = vsel %vm2119, 1, 0
        %v2136 = vsel %vm2120, 1, 0
        %v2137 = vsel %vm2121, 1, 0
        %v2138 = vsel %vm2122, 1, 0
        %v2139 = vsel %vm2123, 1, 0
        %v2140 = vsel %vm2124, 1, 0
        %v2141 = vsel %vm2125, 1, 0
        %v2142 = vsel %vm2126, 1, 0
        %v2143 = vsel %vm2127, 1, 0
        %v2144 = vsel %vm2128, 1, 0
        %v2145 = vsel %vm2129, 1, 0
        %v2146 = vcvt.s32.f32 %v2130
        %v2147 = vcvt.s32.f32 %v2131
        %v2148 = vcvt.s32.f32 %v2132
        %v2149 = vcvt.s32.f32 %v2133
        %v2150 = vcvt.s32.f32 %v2134
        %v2151 = vcvt.s32.f32 %v2135
        %v2152 = vcvt.s32.f32 %v2136
        %v2153 = vcvt.s32.f32 %v2137
        %v2154 = vcvt.s32.f32 %v2138
        %v2155 = vcvt.s32.f32 %v2139
        %v2156 = vcvt.s32.f32 %v2140
        %v2157 = vcvt.s32.f32 %v2141
        %v2158 = vcvt.s32.f32 %v2142
        %v2159 = vcvt.s32.f32 %v2143
        %v2160 = vcvt.s32.f32 %v2144
        %v2161 = vcvt.s32.f32 %v2145
        %v2162 = vld [vmem:[#allocation2] sm:$0xff]
        %v2163 = vld [vmem:[#allocation2 + $0x8] sm:$0xff]
        %v2164 = vld [vmem:[#allocation2 + $0x10] sm:$0xff]
        %v2165 = vld [vmem:[#allocation2 + $0x18] sm:$0xff]
        %v2166 = vld [vmem:[#allocation2 + $0x20] sm:$0xff]
        %v2167 = vld [vmem:[#allocation2 + $0x28] sm:$0xff]
        %v2168 = vld [vmem:[#allocation2 + $0x30] sm:$0xff]
        %v2169 = vld [vmem:[#allocation2 + $0x38] sm:$0xff]
        %2170 = vmatprep.subr.mxu0 0.0
        %2171 = vmatpush1.msra.mxu0 %v2054
        %2172 = vmatprep.subr.mxu0 0.0
        %2173 = vmatpush1.msra.mxu0 %v2055
        %2174 = vmatprep.subr.mxu0 0.0
        %2175 = vmatpush1.msra.mxu0 %v2056
        %2176 = vmatprep.subr.mxu0 0.0
        %2177 = vmatpush1.msra.mxu0 %v2057
        %2178 = vmatprep.subr.mxu0 0.0
        %2179 = vmatpush1.msra.mxu0 %v2058
        %2180 = vmatprep.subr.mxu0 0.0
        %2181 = vmatpush1.msra.mxu0 %v2059
        %2182 = vmatprep.subr.mxu0 0.0
        %2183 = vmatpush1.msra.mxu0 %v2060
        %2184 = vmatprep.subr.mxu0 0.0
        %2185 = vmatpush1.msra.mxu0 %v2061
        %2186 = vmatprep.subr.mxu0 0.0
        %2187 = vmatpush1.msra.mxu0 %v2062
        %2188 = vmatprep.subr.mxu0 0.0
        %2189 = vmatpush1.msra.mxu0 %v2063
        %2190 = vmatprep.subr.mxu0 0.0
        %2191 = vmatpush1.msra.mxu0 %v2064
        %2192 = vmatprep.subr.mxu0 0.0
        %2193 = vmatpush1.msra.mxu0 %v2065
        %2194 = vmatprep.subr.mxu0 0.0
        %2195 = vmatpush1.msra.mxu0 %v2066
        %2196 = vmatprep.subr.mxu0 0.0
        %2197 = vmatpush1.msra.mxu0 %v2067
        %2198 = vmatprep.subr.mxu0 0.0
        %2199 = vmatpush1.msra.mxu0 %v2068
        %2200 = vmatprep.subr.mxu0 0.0
        %2201 = vmatpush1.msra.mxu0 %v2069
        %2202 = vmatprep.subr.mxu0 0.0
        %2203 = vmatpush1.msra.mxu0 %v2070
        %2204 = vmatprep.subr.mxu0 0.0
        %2205 = vmatpush1.msra.mxu0 %v2071
        %2206 = vmatprep.subr.mxu0 0.0
        %2207 = vmatpush1.msra.mxu0 %v2072
        %2208 = vmatprep.subr.mxu0 0.0
        %2209 = vmatpush1.msra.mxu0 %v2073
        %2210 = vmatprep.subr.mxu0 0.0
        %2211 = vmatpush1.msra.mxu0 %v2074
        %2212 = vmatprep.subr.mxu0 0.0
        %2213 = vmatpush1.msra.mxu0 %v2075
        %2214 = vmatprep.subr.mxu0 0.0
        %2215 = vmatpush1.msra.mxu0 %v2076
        %2216 = vmatprep.subr.mxu0 0.0
        %2217 = vmatpush1.msra.mxu0 %v2077
        %2218 = vmatprep.subr.mxu0 0.0
        %2219 = vmatpush1.msra.mxu0 %v2078
        %2220 = vmatprep.subr.mxu0 0.0
        %2221 = vmatpush1.msra.mxu0 %v2079
        %2222 = vmatprep.subr.mxu0 0.0
        %2223 = vmatpush1.msra.mxu0 %v2080
        %2224 = vmatprep.subr.mxu0 0.0
        %2225 = vmatpush1.msra.mxu0 %v2081
        %2226 = vmatprep.subr.mxu0 0.0
        %2227 = vmatpush1.msra.mxu0 %v2082
        %2228 = vmatprep.subr.mxu0 0.0
        %2229 = vmatpush1.msra.mxu0 %v2083
        %2230 = vmatprep.subr.mxu0 0.0
        %2231 = vmatpush1.msra.mxu0 %v2084
        %2232 = vmatprep.subr.mxu0 0.0
        %2233 = vmatpush1.msra.mxu0 %v2085
        %2234 = vmatprep.mubr.f32.mxu0 %v2147
        %2235 = vmatmul.mubr.f32.gmra.mrb[0].mxu0 %v2146
        %v2236 = vpop.f32.mrb[0].mxu0
        %v2237 = vadd.f32 0.0, %v2236
        %v2238 = vpop.f32.mrb[0].mxu0
        %2239 = vmatprep.mubr.f32.mxu0 %v2149
        %2240 = vmatmul.mubr.f32.gmra.mrb[0].mxu0 %v2148
        %v2241 = vpop.f32.mrb[0].mxu0
        %v2242 = vadd.f32 0.0, %v2241
        %v2243 = vpop.f32.mrb[0].mxu0
        %2244 = vmatprep.mubr.f32.mxu0 %v2151
        %2245 = vmatmul.mubr.f32.gmra.mrb[0].mxu0 %v2150
        %v2246 = vpop.f32.mrb[0].mxu0
        %v2247 = vadd.f32 0.0, %v2246
        %v2248 = vpop.f32.mrb[0].mxu0
        %2249 = vmatprep.mubr.f32.mxu0 %v2153
        %2250 = vmatmul.mubr.f32.gmra.mrb[0].mxu0 %v2152
        %v2251 = vpop.f32.mrb[0].mxu0
        %v2252 = vadd.f32 0.0, %v2251
        %v2253 = vpop.f32.mrb[0].mxu0
        %2254 = vmatprep.mubr.f32.mxu0 %v2155
        %2255 = vmatmul.mubr.f32.gmra.mrb[0].mxu0 %v2154
        %v2256 = vpop.f32.mrb[0].mxu0
        %v2257 = vadd.f32 0.0, %v2256
        %v2258 = vpop.f32.mrb[0].mxu0
        %2259 = vmatprep.mubr.f32.mxu0 %v2157
        %2260 = vmatmul.mubr.f32.gmra.mrb[0].mxu0 %v2156
        %v2261 = vpop.f32.mrb[0].mxu0
        %v2262 = vadd.f32 0.0, %v2261
        %v2263 = vpop.f32.mrb[0].mxu0
        %2264 = vmatprep.mubr.f32.mxu0 %v2159
        %2265 = vmatmul.mubr.f32.gmra.mrb[0].mxu0 %v2158
        %v2266 = vpop.f32.mrb[0].mxu0
        %v2267 = vadd.f32 0.0, %v2266
        %v2268 = vpop.f32.mrb[0].mxu0
        %2269 = vmatprep.mubr.f32.mxu0 %v2161
        %2270 = vmatmul.mubr.f32.gmra.mrb[0].mxu0 %v2160
        %v2271 = vpop.f32.mrb[0].mxu0
        %v2272 = vadd.f32 0.0, %v2271
        %v2273 = vpop.f32.mrb[0].mxu0
        %2274 = vdwg.mxu0
        %v2275 = vadd.f32 %v2162, %v2237
        %v2276 = vadd.f32 %v2163, %v2242
        %v2277 = vadd.f32 %v2164, %v2247
        %v2278 = vadd.f32 %v2165, %v2252
        %v2279 = vadd.f32 %v2166, %v2257
        %v2280 = vadd.f32 %v2167, %v2262
        %v2281 = vadd.f32 %v2168, %v2267
        %v2282 = vadd.f32 %v2169, %v2272
        %2283 = vst [vmem:[#allocation2] sm:$0xff] %v2275
        %2284 = vst [vmem:[#allocation2 + $0x8] sm:$0xff] %v2276
        %2285 = vst [vmem:[#allocation2 + $0x10] sm:$0xff] %v2277
        %2286 = vst [vmem:[#allocation2 + $0x18] sm:$0xff] %v2278
        %2287 = vst [vmem:[#allocation2 + $0x20] sm:$0xff] %v2279
        %2288 = vst [vmem:[#allocation2 + $0x28] sm:$0xff] %v2280
        %2289 = vst [vmem:[#allocation2 + $0x30] sm:$0xff] %v2281
        %2290 = vst [vmem:[#allocation2 + $0x38] sm:$0xff] %v2282
        %p2291 = scmp.eq.s32.totalorder %s37, 1
        // Predicated region
        $region85: #{tpu_custom_call.1} parent=63 // pred_check
          %p2292 = pneg %p2291
        $region86: #{tpu_custom_call.1} parent=63 // pred_check_branch
          %2294 = sbr.rel (%p2292) target = $region88
        $region87: #{tpu_custom_call.1} parent=63 // pred_region
          %v2295 = vld [vmem:[%s551] sm:$0xff]
          %v2296 = vld [vmem:[%s551 + $0x8] sm:$0xff]
          %v2297 = vld [vmem:[%s551 + $0x10] sm:$0xff]
          %v2298 = vld [vmem:[%s551 + $0x18] sm:$0xff]
          %v2299 = vld [vmem:[%s551 + $0x20] sm:$0xff]
          %v2300 = vld [vmem:[%s551 + $0x28] sm:$0xff]
          %v2301 = vld [vmem:[%s551 + $0x30] sm:$0xff]
          %v2302 = vld [vmem:[%s551 + $0x38] sm:$0xff]
          %v2303 = vld [vmem:[%s9] sm:$0xff]
          %v2304 = vld [vmem:[%s9 + $0x8] sm:$0xff]
          %v2305 = vld [vmem:[%s10] sm:$0x1]
          %v2307 = vlaneseq
          %v2308 = vshrl.u32 %v2307, 7
          %v2309 = vsub.s32 0, %v2308
          %v2310 = vrot.slane %v2305, %v2309
          %vm2312 = vcmask 130048
          %v2314 = vsel %vm2312, %v2295, 0
          %v2317 = vsel %vm2312, %v2296, 0
          %v2320 = vsel %vm2312, %v2297, 0
          %v2323 = vsel %vm2312, %v2298, 0
          %v2326 = vsel %vm2312, %v2299, 0
          %v2329 = vsel %vm2312, %v2300, 0
          %v2332 = vsel %vm2312, %v2301, 0
          %v2335 = vsel %vm2312, %v2302, 0
          %2337 = vmatprep.subr.mxu0 0.0
          %2338 = vmatpush1.msra.mxu0 %v2303
          %2339 = vmatprep.subr.mxu0 0.0
          %2340 = vmatpush1.msra.mxu0 %v2304
          %2341 = vmatprep.subr.mxu0 0.0
          %2342 = vmatpush1.msra.mxu0 0.0
          %2343 = vmatprep.subr.mxu0 0.0
          %2344 = vmatpush1.msra.mxu0 0.0
          %2345 = vmatprep.subr.mxu0 0.0
          %2346 = vmatpush1.msra.mxu0 0.0
          %2347 = vmatprep.subr.mxu0 0.0
          %2348 = vmatpush1.msra.mxu0 0.0
          %2349 = vmatprep.subr.mxu0 0.0
          %2350 = vmatpush1.msra.mxu0 0.0
          %2351 = vmatprep.subr.mxu0 0.0
          %2352 = vmatpush1.msra.mxu0 0.0
          %2353 = vmatprep.subr.mxu0 0.0
          %2354 = vmatpush1.msra.mxu0 0.0
          %2355 = vmatprep.subr.mxu0 0.0
          %2356 = vmatpush1.msra.mxu0 0.0
          %2357 = vmatprep.subr.mxu0 0.0
          %2358 = vmatpush1.msra.mxu0 0.0
          %2359 = vmatprep.subr.mxu0 0.0
          %2360 = vmatpush1.msra.mxu0 0.0
          %2361 = vmatprep.subr.mxu0 0.0
          %2362 = vmatpush1.msra.mxu0 0.0
          %2363 = vmatprep.subr.mxu0 0.0
          %2364 = vmatpush1.msra.mxu0 0.0
          %2365 = vmatprep.subr.mxu0 0.0
          %2366 = vmatpush1.msra.mxu0 0.0
          %2367 = vmatprep.subr.mxu0 0.0
          %2368 = vmatpush1.msra.mxu0 0.0
          %2369 = vmatprep.subr.mxu0 0.0
          %2370 = vmatpush1.msra.mxu0 0.0
          %2371 = vmatprep.subr.mxu0 0.0
          %2372 = vmatpush1.msra.mxu0 0.0
          %2373 = vmatprep.subr.mxu0 0.0
          %2374 = vmatpush1.msra.mxu0 0.0
          %2375 = vmatprep.subr.mxu0 0.0
          %2376 = vmatpush1.msra.mxu0 0.0
          %2377 = vmatprep.subr.mxu0 0.0
          %2378 = vmatpush1.msra.mxu0 0.0
          %2379 = vmatprep.subr.mxu0 0.0
          %2380 = vmatpush1.msra.mxu0 0.0
          %2381 = vmatprep.subr.mxu0 0.0
          %2382 = vmatpush1.msra.mxu0 0.0
          %2383 = vmatprep.subr.mxu0 0.0
          %2384 = vmatpush1.msra.mxu0 0.0
          %2385 = vmatprep.subr.mxu0 0.0
          %2386 = vmatpush1.msra.mxu0 0.0
          %2387 = vmatprep.subr.mxu0 0.0
          %2388 = vmatpush1.msra.mxu0 0.0
          %2389 = vmatprep.subr.mxu0 0.0
          %2390 = vmatpush1.msra.mxu0 0.0
          %2391 = vmatprep.subr.mxu0 0.0
          %2392 = vmatpush1.msra.mxu0 0.0
          %2393 = vmatprep.subr.mxu0 0.0
          %2394 = vmatpush1.msra.mxu0 0.0
          %2395 = vmatprep.subr.mxu0 0.0
          %2396 = vmatpush1.msra.mxu0 0.0
          %2397 = vmatprep.subr.mxu0 0.0
          %2398 = vmatpush1.msra.mxu0 0.0
          %2399 = vmatprep.subr.mxu0 0.0
          %2400 = vmatpush1.msra.mxu0 0.0
          %2401 = vmatprep.mubr.f32.mxu0 0.0
          %2402 = vmatmul.mubr.f32.gmra.mrb[0].mxu0 %v2314
          %v2403 = vpop.f32.mrb[0].mxu0
          %v2404 = vadd.f32 %v2310, %v2403
          %v2405 = vpop.f32.mrb[0].mxu0
          %2406 = vmatprep.mubr.f32.mxu0 0.0
          %2407 = vmatmul.mubr.f32.gmra.mrb[0].mxu0 %v2317
          %v2408 = vpop.f32.mrb[0].mxu0
          %v2409 = vadd.f32 %v2310, %v2408
          %v2410 = vpop.f32.mrb[0].mxu0
          %2411 = vmatprep.mubr.f32.mxu0 0.0
          %2412 = vmatmul.mubr.f32.gmra.mrb[0].mxu0 %v2320
          %v2413 = vpop.f32.mrb[0].mxu0
          %v2414 = vadd.f32 %v2310, %v2413
          %v2415 = vpop.f32.mrb[0].mxu0
          %2416 = vmatprep.mubr.f32.mxu0 0.0
          %2417 = vmatmul.mubr.f32.gmra.mrb[0].mxu0 %v2323
          %v2418 = vpop.f32.mrb[0].mxu0
          %v2419 = vadd.f32 %v2310, %v2418
          %v2420 = vpop.f32.mrb[0].mxu0
          %2421 = vmatprep.mubr.f32.mxu0 0.0
          %2422 = vmatmul.mubr.f32.gmra.mrb[0].mxu0 %v2326
          %v2423 = vpop.f32.mrb[0].mxu0
          %v2424 = vadd.f32 %v2310, %v2423
          %v2425 = vpop.f32.mrb[0].mxu0
          %2426 = vmatprep.mubr.f32.mxu0 0.0
          %2427 = vmatmul.mubr.f32.gmra.mrb[0].mxu0 %v2329
          %v2428 = vpop.f32.mrb[0].mxu0
          %v2429 = vadd.f32 %v2310, %v2428
          %v2430 = vpop.f32.mrb[0].mxu0
          %2431 = vmatprep.mubr.f32.mxu0 0.0
          %2432 = vmatmul.mubr.f32.gmra.mrb[0].mxu0 %v2332
          %v2433 = vpop.f32.mrb[0].mxu0
          %v2434 = vadd.f32 %v2310, %v2433
          %v2435 = vpop.f32.mrb[0].mxu0
          %2436 = vmatprep.mubr.f32.mxu0 0.0
          %2437 = vmatmul.mubr.f32.gmra.mrb[0].mxu0 %v2335
          %v2438 = vpop.f32.mrb[0].mxu0
          %v2439 = vadd.f32 %v2310, %v2438
          %v2440 = vpop.f32.mrb[0].mxu0
          %2441 = vdwg.mxu0
          %v2442 = vld [vmem:[#allocation2] sm:$0xff]
          %v2443 = vld [vmem:[#allocation2 + $0x8] sm:$0xff]
          %v2444 = vld [vmem:[#allocation2 + $0x10] sm:$0xff]
          %v2445 = vld [vmem:[#allocation2 + $0x18] sm:$0xff]
          %v2446 = vld [vmem:[#allocation2 + $0x20] sm:$0xff]
          %v2447 = vld [vmem:[#allocation2 + $0x28] sm:$0xff]
          %v2448 = vld [vmem:[#allocation2 + $0x30] sm:$0xff]
          %v2449 = vld [vmem:[#allocation2 + $0x38] sm:$0xff]
          %v2450 = vadd.f32 %v2442, %v2404
          %v2451 = vadd.f32 %v2443, %v2409
          %v2452 = vadd.f32 %v2444, %v2414
          %v2453 = vadd.f32 %v2445, %v2419
          %v2454 = vadd.f32 %v2446, %v2424
          %v2455 = vadd.f32 %v2447, %v2429
          %v2456 = vadd.f32 %v2448, %v2434
          %v2457 = vadd.f32 %v2449, %v2439
          %v2458 = vmax.f32 %v2450, 0.0
          %v2459 = vmax.f32 %v2451, 0.0
          %v2460 = vmax.f32 %v2452, 0.0
          %v2461 = vmax.f32 %v2453, 0.0
          %v2462 = vmax.f32 %v2454, 0.0
          %v2463 = vmax.f32 %v2455, 0.0
          %v2464 = vmax.f32 %v2456, 0.0
          %v2465 = vmax.f32 %v2457, 0.0
          %2466 = vst [vmem:[%s538] sm:$0xff] %v2458
          %2467 = vst [vmem:[%s538 + $0x8] sm:$0xff] %v2459
          %2468 = vst [vmem:[%s538 + $0x10] sm:$0xff] %v2460
          %2469 = vst [vmem:[%s538 + $0x18] sm:$0xff] %v2461
          %2470 = vst [vmem:[%s538 + $0x20] sm:$0xff] %v2462
          %2471 = vst [vmem:[%s538 + $0x28] sm:$0xff] %v2463
          %2472 = vst [vmem:[%s538 + $0x30] sm:$0xff] %v2464
          %2473 = vst [vmem:[%s538 + $0x38] sm:$0xff] %v2465
        $region88: #{tpu_custom_call.1} parent=63 // pred_fallthru
          _
        %s2474 = sand.u32 %s308, 1
        %s2475 = scalar_lea.sflag [#allocation5], %s2474
        %s2476 = sand.u32 %s308, 1
        %s2477 = smul.addr %s2476, 64
        %s2478 = scalar_lea.vmem [#allocation11], %s2477
        // Predicated region
        $region89: #{tpu_custom_call.1} parent=63 // pred_check
          %p2479 = pneg %p318
        $region90: #{tpu_custom_call.1} parent=63 // pred_check_branch
          %2481 = sbr.rel (%p2479) target = $region92
        $region91: #{tpu_custom_call.1} parent=63 // pred_region
          %s2482 = smul.u32 8, %s36
          %s2484 = ssub.s32 1024, 1024
          %2485 = vsyncadd %s2475, %s2484
          %s2486 = smul.addr %s2482, 128
          %s2487 = scalar_lea.hbm %s11, %s2486
          %s2488 = sshll.u32 %s2478, 4
          %s2489 = int_to_ptr.vmem [resolvable:$true] %s2488
          %2494 = dma.vmem_to_hbm [thread:$0]  %s2489, 1024, %s2487, %s2475, 128, 128, 8
        $region92: #{tpu_custom_call.1} parent=63 // pred_fallthru
          _
      $region64: #{tpu_custom_call.1} parent=5 // pred_fallthru
        _
      %p2495 = scmp.le.s32.totalorder 2, %s27
      // Predicated region
      $region93: #{tpu_custom_call.1} parent=5 // pred_check
        %p2496 = pneg %p2495
      $region94: #{tpu_custom_call.1} parent=5 // pred_check_branch
        %2498 = sbr.rel (%p2496) target = $region96
      $region95: #{tpu_custom_call.1} parent=5 // pred_region
        %s2499 = ssub.s32 %s27, 2
        // Predicated region
        $region97: #{tpu_custom_call.1} parent=95 // pred_check
          %p2500 = pneg %p324
        $region98: #{tpu_custom_call.1} parent=95 // pred_check_branch
          %2502 = sbr.rel (%p2500) target = $region100
        $region99: #{tpu_custom_call.1} parent=95 // pred_region
          %s2503 = sand.u32 %s309, 1
          %s2504 = scalar_lea.sflag [#allocation5], %s2503
          %s2505 = sand.u32 %s309, 1
          %s2506 = smul.addr %s2505, 64
          %s2507 = scalar_lea.vmem [#allocation11], %s2506
          %2508 = dma.done %s2504, 1024
        $region100: #{tpu_custom_call.1} parent=95 // pred_fallthru
          _
      $region96: #{tpu_custom_call.1} parent=5 // pred_fallthru
        _
    $region6: #{tpu_custom_call.1} parent=1 // loop_footer
      %s31 = sadd.s32 1, %s27
    $region7: #{tpu_custom_call.1} parent=1 // loop_footer_branch
      %26 = sbr.rel target = $region3
    $region8: #{tpu_custom_call.1} parent=1 // loop_exit
      _
    %2509 = vsyncpa [#allocation4], 1
    %s2510 = scalar_lea.sflag [#allocation4], 1
    %2511 = vsyncpa %s2510, 1
    %2512 = vsyncpa [#allocation7], 1
    %s2513 = scalar_lea.sflag [#allocation7], 1
    %2514 = vsyncpa %s2513, 1
    %2515 = vsyncpa [#allocation10], 1
    %2516 = vsyncpa [#allocation5], 1
    %s2517 = scalar_lea.sflag [#allocation5], 1
    %2518 = vsyncpa %s2517, 1

</llo_original>
